<compile_context>
chip_gen: v6e
topology: v6e:2x2x1
jax: 0.10.0
libtpu: 0.0.40
codegen_flags: <defaults>
</compile_context>

<pallas_src>
import jax
import jax.numpy as jnp
from jax.experimental import pallas as pl
from jax.experimental.pallas import tpu as pltpu

KSIZE = 7
PAD = 3                 # padding for kernel_size=7 (matches the PyTorch default)
_C_CHUNK = 8            # channels reduced per unrolled inner step (bounds live vregs)
_TILE_BYTES = 2 << 20   # per-grid-step x tile budget (Pallas double-buffers it)
_MAX_TC = 64            # cap on channels per grid step (bounds unroll length)


def _choose_c_tile(C, H, W):
    """Largest divisor of C whose (TC, H, W) f32 tile stays within budget."""
    cap = min(_MAX_TC, max(1, _TILE_BYTES // (H * W * 4)))
    tc = 1
    for d in range(1, C + 1):
        if C % d == 0 and d <= cap:
            tc = d
    return tc


def _make_kernel(C, TC, H, W):
    inv_c = 1.0 / float(C)
    HP, WP = H + 2 * PAD, W + 2 * PAD

    def kernel(w_ref, x_ref, o_ref, sum_ref, max_ref, pad_ref):
        c = pl.program_id(1)
        nc = pl.num_programs(1)

        @pl.when(c == 0)
        def _init():
            sum_ref[...] = jnp.zeros((H, W), jnp.float32)
            max_ref[...] = jnp.full((H, W), -jnp.inf, jnp.float32)

        # Channel reduction over this (1, TC, H, W) tile.  The running sum/max
        # are loaded from scratch once, accumulated in registers chunk-by-chunk
        # (only ~_C_CHUNK*H*W elements live at a time), then stored back once.
        s = sum_ref[...]
        m = max_ref[...]
        for c0 in range(0, TC, _C_CHUNK):
            c1 = min(c0 + _C_CHUNK, TC)
            xc = x_ref[0, c0:c1, :, :].astype(jnp.float32)     # (chunk, H, W)
            s = s + jnp.sum(xc, axis=0)
            m = jnp.maximum(m, jnp.max(xc, axis=0))
        sum_ref[...] = s
        max_ref[...] = m

        # Pad + conv + sigmoid only after the last channel tile of this batch
        # element.  Uses the in-register accumulators directly (no re-load).
        @pl.when(c == nc - 1)
        def _finalize():
            avg = s * inv_c
            mx = m

            # Zero-padded cat([avg, max]) feature map (border stays zero); this
            # small memset runs once per batch element, not on every grid step.
            pad_ref[...] = jnp.zeros((2, HP, WP), jnp.float32)
            pad_ref[0, PAD:PAD + H, PAD:PAD + W] = avg
            pad_ref[1, PAD:PAD + H, PAD:PAD + W] = mx

            # 7x7 conv, 2 -> 1 channels, no bias.  Each padded row band is
            # loaded once; the 7 kx offsets are slices of that in-register
            # value.
            acc = jnp.zeros((H, W), jnp.float32)
            for cc in range(2):
                for ky in range(KSIZE):
                    band = pad_ref[cc, ky:ky + H, :]            # (H, W + 2*PAD)
                    for kx in range(KSIZE):
                        wv = w_ref[cc * KSIZE * KSIZE + ky * KSIZE + kx]
                        acc = acc + wv * band[:, kx:kx + W]

            out = 1.0 / (1.0 + jnp.exp(-acc))                   # exact sigmoid
            o_ref[0, 0] = out.astype(o_ref.dtype)

    return kernel


def spatial_attention(x, weight):
    """x: (N, C, H, W); weight: (1, 2, 7, 7) -> (N, 1, H, W).

    Works for f32 or bf16 x (reduction/conv accumulate in f32 internally).
    """
    N, C, H, W = x.shape
    TC = _choose_c_tile(C, H, W)
    n_ct = C // TC
    w_flat = weight.reshape(-1).astype(jnp.float32)             # (98,)

    kernel = _make_kernel(C, TC, H, W)

    cost = pl.CostEstimate(
        flops=N * (2 * C + 2 * 2 * KSIZE * KSIZE + 4) * H * W,
        transcendentals=N * H * W,
        bytes_accessed=(N * C * H * W + N * H * W) * x.dtype.itemsize
        + w_flat.size * 4,
    )

    # TODO(synk): for very small W (<128) a lane-dense (N, H*W) output layout
    # would cut masked partial stores further; kept NCHW here to avoid an
    # in-kernel (H*W,)->(H,W) relayout and keep the module's native layout.
    return pl.pallas_call(
        kernel,
        out_shape=jax.ShapeDtypeStruct((N, 1, H, W), x.dtype),
        grid=(N, n_ct),
        in_specs=[
            # conv taps in SMEM (scalar loads)
            pl.BlockSpec(memory_space=pltpu.MemorySpace.SMEM),
            # channel-tiled, double-buffered slab of x
            pl.BlockSpec((1, TC, H, W), lambda n, c: (n, c, 0, 0)),
        ],
        out_specs=pl.BlockSpec((1, 1, H, W), lambda n, c: (n, 0, 0, 0)),
        scratch_shapes=[
            pltpu.VMEM((H, W), jnp.float32),                    # channel sum
            pltpu.VMEM((H, W), jnp.float32),                    # channel max
            pltpu.VMEM((2, H + 2 * PAD, W + 2 * PAD), jnp.float32),  # padded cat
        ],
        compiler_params=pltpu.CompilerParams(
            dimension_semantics=("parallel", "arbitrary"),
            vmem_limit_bytes=48 * 1024 * 1024,
        ),
        cost_estimate=cost,
    )(w_flat, x)


def reference(x, weight):
    """Pure-JAX reference mirroring the PyTorch forward."""
    avg = jnp.mean(x, axis=1, keepdims=True)
    mx = jnp.max(x, axis=1, keepdims=True)
    cat = jnp.concatenate([avg, mx], axis=1)
    out = jax.lax.conv_general_dilated(
        cat, weight,
        window_strides=(1, 1),
        padding=((PAD, PAD), (PAD, PAD)),
        dimension_numbers=("NCHW", "OIHW", "NCHW"),
    )
    return jax.nn.sigmoid(out)


if __name__ == "__main__":
    key = jax.random.PRNGKey(0)
    kx, kw = jax.random.split(key)

    # Small deterministic shapes: N=2, C=4, H=W=16
    x = jax.random.normal(kx, (2, 4, 16, 16), dtype=jnp.float32)

    # Conv2d(2, 1, 7, padding=3, bias=False) weight, Kaiming-like scale.
    fan_in = 2 * KSIZE * KSIZE
    weight = jax.random.normal(kw, (1, 2, KSIZE, KSIZE), dtype=jnp.float32) * (
        1.0 / jnp.sqrt(fan_in)
    )

    y = spatial_attention(x, weight)
    y = jax.block_until_ready(y)

    y_ref = jax.block_until_ready(reference(x, weight))
    assert y.shape == (2, 1, 16, 16), y.shape
    assert jnp.allclose(y, y_ref, atol=1e-5, rtol=1e-5), (
        float(jnp.max(jnp.abs(y - y_ref)))
    )
    print("KERNEL_OK")
</pallas_src>

<mosaic_0001>
module attributes {stable_mosaic.version = 11 : i64} {
  func.func @kernel(%arg0: i32, %arg1: i32, %arg2: memref<98xf32, #tpu.memory_space<smem>>, %arg3: memref<1x4x16x16xf32, #tpu.memory_space<vmem>>, %arg4: memref<1x1x16x16xf32, #tpu.memory_space<vmem>>, %arg5: memref<16x16xf32, #tpu.memory_space<vmem>>, %arg6: memref<16x16xf32, #tpu.memory_space<vmem>>, %arg7: memref<2x22x22xf32, #tpu.memory_space<vmem>>) attributes {dimension_semantics = [#tpu.dimension_semantics<parallel>, #tpu.dimension_semantics<arbitrary>], iteration_bounds = array<i64: 2, 1>, scalar_prefetch = 0 : i64, scratch_operands = 3 : i64, tpu.core_type = #tpu.core_type<tc>, window_params = [{transform_indices = @transform_0, window_bounds = array<i64: 98>}, {transform_indices = @transform_1, window_bounds = array<i64: 1, 4, 16, 16>}, {transform_indices = @transform_2, window_bounds = array<i64: 1, 1, 16, 16>}]} {
    %c0_i32 = arith.constant 0 : i32
    %0 = arith.cmpi eq, %arg1, %c0_i32 : i32
    %1 = arith.extui %0 : i1 to i32
    %c0_i32_0 = arith.constant 0 : i32
    %2 = arith.cmpi ne, %1, %c0_i32_0 : i32
    scf.if %2 {
      %cst_15 = arith.constant 0.000000e+00 : f32
      %16 = vector.broadcast %cst_15 : f32 to vector<16x16xf32>
      %c0_16 = arith.constant 0 : index
      %c0_17 = arith.constant 0 : index
      %17 = vector.load %arg5[%c0_16, %c0_17] : memref<16x16xf32, #tpu.memory_space<vmem>>, vector<16x16xf32>
      tpu.vector_store %arg5[%c0_16, %c0_17], %16 {strides = array<i32>} : memref<16x16xf32, #tpu.memory_space<vmem>>, vector<16x16xf32>,
      %cst_18 = arith.constant 0xFF800000 : f32
      %18 = vector.broadcast %cst_18 : f32 to vector<16x16xf32>
      %c0_19 = arith.constant 0 : index
      %c0_20 = arith.constant 0 : index
      %19 = vector.load %arg6[%c0_19, %c0_20] : memref<16x16xf32, #tpu.memory_space<vmem>>, vector<16x16xf32>
      tpu.vector_store %arg6[%c0_19, %c0_20], %18 {strides = array<i32>} : memref<16x16xf32, #tpu.memory_space<vmem>>, vector<16x16xf32>,
    } else {
    }
    %c0 = arith.constant 0 : index
    %c0_1 = arith.constant 0 : index
    %3 = vector.load %arg5[%c0, %c0_1] : memref<16x16xf32, #tpu.memory_space<vmem>>, vector<16x16xf32>
    %c0_2 = arith.constant 0 : index
    %c0_3 = arith.constant 0 : index
    %4 = vector.load %arg6[%c0_2, %c0_3] : memref<16x16xf32, #tpu.memory_space<vmem>>, vector<16x16xf32>
    %c0_4 = arith.constant 0 : index
    %c0_5 = arith.constant 0 : index
    %c0_6 = arith.constant 0 : index
    %c0_7 = arith.constant 0 : index
    %5 = vector.load %arg3[%c0_4, %c0_5, %c0_6, %c0_7] : memref<1x4x16x16xf32, #tpu.memory_space<vmem>>, vector<1x4x16x16xf32>
    %6 = vector.shape_cast %5 : vector<1x4x16x16xf32> to vector<4x16x16xf32>
    %cst = arith.constant dense<0.000000e+00> : vector<16x16xf32>
    %7 = vector.multi_reduction <add>, %6, %cst [0] : vector<4x16x16xf32> to vector<16x16xf32>
    %8 = arith.addf %3, %7 : vector<16x16xf32>
    %cst_8 = arith.constant dense<0xFF800000> : vector<16x16xf32>
    %9 = vector.multi_reduction <maximumf>, %6, %cst_8 [0] : vector<4x16x16xf32> to vector<16x16xf32>
    %10 = arith.maximumf %4, %9 : vector<16x16xf32>
    %c0_9 = arith.constant 0 : index
    %c0_10 = arith.constant 0 : index
    %11 = vector.load %arg5[%c0_9, %c0_10] : memref<16x16xf32, #tpu.memory_space<vmem>>, vector<16x16xf32>
    tpu.vector_store %arg5[%c0_9, %c0_10], %8 {strides = array<i32>} : memref<16x16xf32, #tpu.memory_space<vmem>>, vector<16x16xf32>,
    %c0_11 = arith.constant 0 : index
    %c0_12 = arith.constant 0 : index
    %12 = vector.load %arg6[%c0_11, %c0_12] : memref<16x16xf32, #tpu.memory_space<vmem>>, vector<16x16xf32>
    tpu.vector_store %arg6[%c0_11, %c0_12], %10 {strides = array<i32>} : memref<16x16xf32, #tpu.memory_space<vmem>>, vector<16x16xf32>,
    %c0_i32_13 = arith.constant 0 : i32
    %13 = arith.cmpi eq, %arg1, %c0_i32_13 : i32
    %14 = arith.extui %13 : i1 to i32
    %c0_i32_14 = arith.constant 0 : i32
    %15 = arith.cmpi ne, %14, %c0_i32_14 : i32
    scf.if %15 {
      %cst_15 = arith.constant 2.500000e-01 : f32
      %16 = vector.broadcast %cst_15 : f32 to vector<16x16xf32>
      %17 = arith.mulf %8, %16 : vector<16x16xf32>
      %cst_16 = arith.constant 0.000000e+00 : f32
      %18 = vector.broadcast %cst_16 : f32 to vector<2x22x22xf32>
      %c0_17 = arith.constant 0 : index
      %c0_18 = arith.constant 0 : index
      %c0_19 = arith.constant 0 : index
      %19 = vector.load %arg7[%c0_17, %c0_18, %c0_19] : memref<2x22x22xf32, #tpu.memory_space<vmem>>, vector<2x22x22xf32>
      tpu.vector_store %arg7[%c0_17, %c0_18, %c0_19], %18 {strides = array<i32>} : memref<2x22x22xf32, #tpu.memory_space<vmem>>, vector<2x22x22xf32>,
      %c0_20 = arith.constant 0 : index
      %c3 = arith.constant 3 : index
      %c3_21 = arith.constant 3 : index
      %20 = vector.load %arg7[%c0_20, %c3, %c3_21] : memref<2x22x22xf32, #tpu.memory_space<vmem>>, vector<1x16x16xf32>
      %21 = vector.shape_cast %20 : vector<1x16x16xf32> to vector<16x16xf32>
      %22 = vector.shape_cast %17 : vector<16x16xf32> to vector<1x16x16xf32>
      tpu.vector_store %arg7[%c0_20, %c3, %c3_21], %22 {strides = array<i32>} : memref<2x22x22xf32, #tpu.memory_space<vmem>>, vector<1x16x16xf32>,
      %c1 = arith.constant 1 : index
      %c3_22 = arith.constant 3 : index
      %c3_23 = arith.constant 3 : index
      %23 = vector.load %arg7[%c1, %c3_22, %c3_23] : memref<2x22x22xf32, #tpu.memory_space<vmem>>, vector<1x16x16xf32>
      %24 = vector.shape_cast %23 : vector<1x16x16xf32> to vector<16x16xf32>
      %25 = vector.shape_cast %10 : vector<16x16xf32> to vector<1x16x16xf32>
      tpu.vector_store %arg7[%c1, %c3_22, %c3_23], %25 {strides = array<i32>} : memref<2x22x22xf32, #tpu.memory_space<vmem>>, vector<1x16x16xf32>,
      %cst_24 = arith.constant 0.000000e+00 : f32
      %26 = vector.broadcast %cst_24 : f32 to vector<16x16xf32>
      %c0_25 = arith.constant 0 : index
      %c0_26 = arith.constant 0 : index
      %c0_27 = arith.constant 0 : index
      %27 = vector.load %arg7[%c0_25, %c0_26, %c0_27] : memref<2x22x22xf32, #tpu.memory_space<vmem>>, vector<1x16x22xf32>
      %28 = vector.shape_cast %27 : vector<1x16x22xf32> to vector<16x22xf32>
      %c0_28 = arith.constant 0 : index
      %29 = memref.load %arg2[%c0_28] : memref<98xf32, #tpu.memory_space<smem>>
      %30 = vector.extract_strided_slice %28 {offsets = [0, 0], sizes = [16, 16], strides = [1, 1]} : vector<16x22xf32> to vector<16x16xf32>
      %31 = vector.broadcast %29 : f32 to vector<16x16xf32>
      %32 = arith.mulf %31, %30 : vector<16x16xf32>
      %33 = arith.addf %26, %32 : vector<16x16xf32>
      %c1_29 = arith.constant 1 : index
      %34 = memref.load %arg2[%c1_29] : memref<98xf32, #tpu.memory_space<smem>>
      %35 = vector.extract_strided_slice %28 {offsets = [0, 1], sizes = [16, 16], strides = [1, 1]} : vector<16x22xf32> to vector<16x16xf32>
      %36 = vector.broadcast %34 : f32 to vector<16x16xf32>
      %37 = arith.mulf %36, %35 : vector<16x16xf32>
      %38 = arith.addf %33, %37 : vector<16x16xf32>
      %c2 = arith.constant 2 : index
      %39 = memref.load %arg2[%c2] : memref<98xf32, #tpu.memory_space<smem>>
      %40 = vector.extract_strided_slice %28 {offsets = [0, 2], sizes = [16, 16], strides = [1, 1]} : vector<16x22xf32> to vector<16x16xf32>
      %41 = vector.broadcast %39 : f32 to vector<16x16xf32>
      %42 = arith.mulf %41, %40 : vector<16x16xf32>
      %43 = arith.addf %38, %42 : vector<16x16xf32>
      %c3_30 = arith.constant 3 : index
      %44 = memref.load %arg2[%c3_30] : memref<98xf32, #tpu.memory_space<smem>>
      %45 = vector.extract_strided_slice %28 {offsets = [0, 3], sizes = [16, 16], strides = [1, 1]} : vector<16x22xf32> to vector<16x16xf32>
      %46 = vector.broadcast %44 : f32 to vector<16x16xf32>
      %47 = arith.mulf %46, %45 : vector<16x16xf32>
      %48 = arith.addf %43, %47 : vector<16x16xf32>
      %c4 = arith.constant 4 : index
      %49 = memref.load %arg2[%c4] : memref<98xf32, #tpu.memory_space<smem>>
      %50 = vector.extract_strided_slice %28 {offsets = [0, 4], sizes = [16, 16], strides = [1, 1]} : vector<16x22xf32> to vector<16x16xf32>
      %51 = vector.broadcast %49 : f32 to vector<16x16xf32>
      %52 = arith.mulf %51, %50 : vector<16x16xf32>
      %53 = arith.addf %48, %52 : vector<16x16xf32>
      %c5 = arith.constant 5 : index
      %54 = memref.load %arg2[%c5] : memref<98xf32, #tpu.memory_space<smem>>
      %55 = vector.extract_strided_slice %28 {offsets = [0, 5], sizes = [16, 16], strides = [1, 1]} : vector<16x22xf32> to vector<16x16xf32>
      %56 = vector.broadcast %54 : f32 to vector<16x16xf32>
      %57 = arith.mulf %56, %55 : vector<16x16xf32>
      %58 = arith.addf %53, %57 : vector<16x16xf32>
      %c6 = arith.constant 6 : index
      %59 = memref.load %arg2[%c6] : memref<98xf32, #tpu.memory_space<smem>>
      %60 = vector.extract_strided_slice %28 {offsets = [0, 6], sizes = [16, 16], strides = [1, 1]} : vector<16x22xf32> to vector<16x16xf32>
      %61 = vector.broadcast %59 : f32 to vector<16x16xf32>
      %62 = arith.mulf %61, %60 : vector<16x16xf32>
      %63 = arith.addf %58, %62 : vector<16x16xf32>
      %c0_31 = arith.constant 0 : index
      %c1_32 = arith.constant 1 : index
      %c0_33 = arith.constant 0 : index
      %64 = vector.load %arg7[%c0_31, %c1_32, %c0_33] : memref<2x22x22xf32, #tpu.memory_space<vmem>>, vector<1x16x22xf32>
      %65 = vector.shape_cast %64 : vector<1x16x22xf32> to vector<16x22xf32>
      %c7 = arith.constant 7 : index
      %66 = memref.load %arg2[%c7] : memref<98xf32, #tpu.memory_space<smem>>
      %67 = vector.extract_strided_slice %65 {offsets = [0, 0], sizes = [16, 16], strides = [1, 1]} : vector<16x22xf32> to vector<16x16xf32>
      %68 = vector.broadcast %66 : f32 to vector<16x16xf32>
      %69 = arith.mulf %68, %67 : vector<16x16xf32>
      %70 = arith.addf %63, %69 : vector<16x16xf32>
      %c8 = arith.constant 8 : index
      %71 = memref.load %arg2[%c8] : memref<98xf32, #tpu.memory_space<smem>>
      %72 = vector.extract_strided_slice %65 {offsets = [0, 1], sizes = [16, 16], strides = [1, 1]} : vector<16x22xf32> to vector<16x16xf32>
      %73 = vector.broadcast %71 : f32 to vector<16x16xf32>
      %74 = arith.mulf %73, %72 : vector<16x16xf32>
      %75 = arith.addf %70, %74 : vector<16x16xf32>
      %c9 = arith.constant 9 : index
      %76 = memref.load %arg2[%c9] : memref<98xf32, #tpu.memory_space<smem>>
      %77 = vector.extract_strided_slice %65 {offsets = [0, 2], sizes = [16, 16], strides = [1, 1]} : vector<16x22xf32> to vector<16x16xf32>
      %78 = vector.broadcast %76 : f32 to vector<16x16xf32>
      %79 = arith.mulf %78, %77 : vector<16x16xf32>
      %80 = arith.addf %75, %79 : vector<16x16xf32>
      %c10 = arith.constant 10 : index
      %81 = memref.load %arg2[%c10] : memref<98xf32, #tpu.memory_space<smem>>
      %82 = vector.extract_strided_slice %65 {offsets = [0, 3], sizes = [16, 16], strides = [1, 1]} : vector<16x22xf32> to vector<16x16xf32>
      %83 = vector.broadcast %81 : f32 to vector<16x16xf32>
      %84 = arith.mulf %83, %82 : vector<16x16xf32>
      %85 = arith.addf %80, %84 : vector<16x16xf32>
      %c11 = arith.constant 11 : index
      %86 = memref.load %arg2[%c11] : memref<98xf32, #tpu.memory_space<smem>>
      %87 = vector.extract_strided_slice %65 {offsets = [0, 4], sizes = [16, 16], strides = [1, 1]} : vector<16x22xf32> to vector<16x16xf32>
      %88 = vector.broadcast %86 : f32 to vector<16x16xf32>
      %89 = arith.mulf %88, %87 : vector<16x16xf32>
      %90 = arith.addf %85, %89 : vector<16x16xf32>
      %c12 = arith.constant 12 : index
      %91 = memref.load %arg2[%c12] : memref<98xf32, #tpu.memory_space<smem>>
      %92 = vector.extract_strided_slice %65 {offsets = [0, 5], sizes = [16, 16], strides = [1, 1]} : vector<16x22xf32> to vector<16x16xf32>
      %93 = vector.broadcast %91 : f32 to vector<16x16xf32>
      %94 = arith.mulf %93, %92 : vector<16x16xf32>
      %95 = arith.addf %90, %94 : vector<16x16xf32>
      %c13 = arith.constant 13 : index
      %96 = memref.load %arg2[%c13] : memref<98xf32, #tpu.memory_space<smem>>
      %97 = vector.extract_strided_slice %65 {offsets = [0, 6], sizes = [16, 16], strides = [1, 1]} : vector<16x22xf32> to vector<16x16xf32>
      %98 = vector.broadcast %96 : f32 to vector<16x16xf32>
      %99 = arith.mulf %98, %97 : vector<16x16xf32>
      %100 = arith.addf %95, %99 : vector<16x16xf32>
      %c0_34 = arith.constant 0 : index
      %c2_35 = arith.constant 2 : index
      %c0_36 = arith.constant 0 : index
      %101 = vector.load %arg7[%c0_34, %c2_35, %c0_36] : memref<2x22x22xf32, #tpu.memory_space<vmem>>, vector<1x16x22xf32>
      %102 = vector.shape_cast %101 : vector<1x16x22xf32> to vector<16x22xf32>
      %c14 = arith.constant 14 : index
      %103 = memref.load %arg2[%c14] : memref<98xf32, #tpu.memory_space<smem>>
      %104 = vector.extract_strided_slice %102 {offsets = [0, 0], sizes = [16, 16], strides = [1, 1]} : vector<16x22xf32> to vector<16x16xf32>
      %105 = vector.broadcast %103 : f32 to vector<16x16xf32>
      %106 = arith.mulf %105, %104 : vector<16x16xf32>
      %107 = arith.addf %100, %106 : vector<16x16xf32>
      %c15 = arith.constant 15 : index
      %108 = memref.load %arg2[%c15] : memref<98xf32, #tpu.memory_space<smem>>
      %109 = vector.extract_strided_slice %102 {offsets = [0, 1], sizes = [16, 16], strides = [1, 1]} : vector<16x22xf32> to vector<16x16xf32>
      %110 = vector.broadcast %108 : f32 to vector<16x16xf32>
      %111 = arith.mulf %110, %109 : vector<16x16xf32>
      %112 = arith.addf %107, %111 : vector<16x16xf32>
      %c16 = arith.constant 16 : index
      %113 = memref.load %arg2[%c16] : memref<98xf32, #tpu.memory_space<smem>>
      %114 = vector.extract_strided_slice %102 {offsets = [0, 2], sizes = [16, 16], strides = [1, 1]} : vector<16x22xf32> to vector<16x16xf32>
      %115 = vector.broadcast %113 : f32 to vector<16x16xf32>
      %116 = arith.mulf %115, %114 : vector<16x16xf32>
      %117 = arith.addf %112, %116 : vector<16x16xf32>
      %c17 = arith.constant 17 : index
      %118 = memref.load %arg2[%c17] : memref<98xf32, #tpu.memory_space<smem>>
      %119 = vector.extract_strided_slice %102 {offsets = [0, 3], sizes = [16, 16], strides = [1, 1]} : vector<16x22xf32> to vector<16x16xf32>
      %120 = vector.broadcast %118 : f32 to vector<16x16xf32>
      %121 = arith.mulf %120, %119 : vector<16x16xf32>
      %122 = arith.addf %117, %121 : vector<16x16xf32>
      %c18 = arith.constant 18 : index
      %123 = memref.load %arg2[%c18] : memref<98xf32, #tpu.memory_space<smem>>
      %124 = vector.extract_strided_slice %102 {offsets = [0, 4], sizes = [16, 16], strides = [1, 1]} : vector<16x22xf32> to vector<16x16xf32>
      %125 = vector.broadcast %123 : f32 to vector<16x16xf32>
      %126 = arith.mulf %125, %124 : vector<16x16xf32>
      %127 = arith.addf %122, %126 : vector<16x16xf32>
      %c19 = arith.constant 19 : index
      %128 = memref.load %arg2[%c19] : memref<98xf32, #tpu.memory_space<smem>>
      %129 = vector.extract_strided_slice %102 {offsets = [0, 5], sizes = [16, 16], strides = [1, 1]} : vector<16x22xf32> to vector<16x16xf32>
      %130 = vector.broadcast %128 : f32 to vector<16x16xf32>
      %131 = arith.mulf %130, %129 : vector<16x16xf32>
      %132 = arith.addf %127, %131 : vector<16x16xf32>
      %c20 = arith.constant 20 : index
      %133 = memref.load %arg2[%c20] : memref<98xf32, #tpu.memory_space<smem>>
      %134 = vector.extract_strided_slice %102 {offsets = [0, 6], sizes = [16, 16], strides = [1, 1]} : vector<16x22xf32> to vector<16x16xf32>
      %135 = vector.broadcast %133 : f32 to vector<16x16xf32>
      %136 = arith.mulf %135, %134 : vector<16x16xf32>
      %137 = arith.addf %132, %136 : vector<16x16xf32>
      %c0_37 = arith.constant 0 : index
      %c3_38 = arith.constant 3 : index
      %c0_39 = arith.constant 0 : index
      %138 = vector.load %arg7[%c0_37, %c3_38, %c0_39] : memref<2x22x22xf32, #tpu.memory_space<vmem>>, vector<1x16x22xf32>
      %139 = vector.shape_cast %138 : vector<1x16x22xf32> to vector<16x22xf32>
      %c21 = arith.constant 21 : index
      %140 = memref.load %arg2[%c21] : memref<98xf32, #tpu.memory_space<smem>>
      %141 = vector.extract_strided_slice %139 {offsets = [0, 0], sizes = [16, 16], strides = [1, 1]} : vector<16x22xf32> to vector<16x16xf32>
      %142 = vector.broadcast %140 : f32 to vector<16x16xf32>
      %143 = arith.mulf %142, %141 : vector<16x16xf32>
      %144 = arith.addf %137, %143 : vector<16x16xf32>
      %c22 = arith.constant 22 : index
      %145 = memref.load %arg2[%c22] : memref<98xf32, #tpu.memory_space<smem>>
      %146 = vector.extract_strided_slice %139 {offsets = [0, 1], sizes = [16, 16], strides = [1, 1]} : vector<16x22xf32> to vector<16x16xf32>
      %147 = vector.broadcast %145 : f32 to vector<16x16xf32>
      %148 = arith.mulf %147, %146 : vector<16x16xf32>
      %149 = arith.addf %144, %148 : vector<16x16xf32>
      %c23 = arith.constant 23 : index
      %150 = memref.load %arg2[%c23] : memref<98xf32, #tpu.memory_space<smem>>
      %151 = vector.extract_strided_slice %139 {offsets = [0, 2], sizes = [16, 16], strides = [1, 1]} : vector<16x22xf32> to vector<16x16xf32>
      %152 = vector.broadcast %150 : f32 to vector<16x16xf32>
      %153 = arith.mulf %152, %151 : vector<16x16xf32>
      %154 = arith.addf %149, %153 : vector<16x16xf32>
      %c24 = arith.constant 24 : index
      %155 = memref.load %arg2[%c24] : memref<98xf32, #tpu.memory_space<smem>>
      %156 = vector.extract_strided_slice %139 {offsets = [0, 3], sizes = [16, 16], strides = [1, 1]} : vector<16x22xf32> to vector<16x16xf32>
      %157 = vector.broadcast %155 : f32 to vector<16x16xf32>
      %158 = arith.mulf %157, %156 : vector<16x16xf32>
      %159 = arith.addf %154, %158 : vector<16x16xf32>
      %c25 = arith.constant 25 : index
      %160 = memref.load %arg2[%c25] : memref<98xf32, #tpu.memory_space<smem>>
      %161 = vector.extract_strided_slice %139 {offsets = [0, 4], sizes = [16, 16], strides = [1, 1]} : vector<16x22xf32> to vector<16x16xf32>
      %162 = vector.broadcast %160 : f32 to vector<16x16xf32>
      %163 = arith.mulf %162, %161 : vector<16x16xf32>
      %164 = arith.addf %159, %163 : vector<16x16xf32>
      %c26 = arith.constant 26 : index
      %165 = memref.load %arg2[%c26] : memref<98xf32, #tpu.memory_space<smem>>
      %166 = vector.extract_strided_slice %139 {offsets = [0, 5], sizes = [16, 16], strides = [1, 1]} : vector<16x22xf32> to vector<16x16xf32>
      %167 = vector.broadcast %165 : f32 to vector<16x16xf32>
      %168 = arith.mulf %167, %166 : vector<16x16xf32>
      %169 = arith.addf %164, %168 : vector<16x16xf32>
      %c27 = arith.constant 27 : index
      %170 = memref.load %arg2[%c27] : memref<98xf32, #tpu.memory_space<smem>>
      %171 = vector.extract_strided_slice %139 {offsets = [0, 6], sizes = [16, 16], strides = [1, 1]} : vector<16x22xf32> to vector<16x16xf32>
      %172 = vector.broadcast %170 : f32 to vector<16x16xf32>
      %173 = arith.mulf %172, %171 : vector<16x16xf32>
      %174 = arith.addf %169, %173 : vector<16x16xf32>
      %c0_40 = arith.constant 0 : index
      %c4_41 = arith.constant 4 : index
      %c0_42 = arith.constant 0 : index
      %175 = vector.load %arg7[%c0_40, %c4_41, %c0_42] : memref<2x22x22xf32, #tpu.memory_space<vmem>>, vector<1x16x22xf32>
      %176 = vector.shape_cast %175 : vector<1x16x22xf32> to vector<16x22xf32>
      %c28 = arith.constant 28 : index
      %177 = memref.load %arg2[%c28] : memref<98xf32, #tpu.memory_space<smem>>
      %178 = vector.extract_strided_slice %176 {offsets = [0, 0], sizes = [16, 16], strides = [1, 1]} : vector<16x22xf32> to vector<16x16xf32>
      %179 = vector.broadcast %177 : f32 to vector<16x16xf32>
      %180 = arith.mulf %179, %178 : vector<16x16xf32>
      %181 = arith.addf %174, %180 : vector<16x16xf32>
      %c29 = arith.constant 29 : index
      %182 = memref.load %arg2[%c29] : memref<98xf32, #tpu.memory_space<smem>>
      %183 = vector.extract_strided_slice %176 {offsets = [0, 1], sizes = [16, 16], strides = [1, 1]} : vector<16x22xf32> to vector<16x16xf32>
      %184 = vector.broadcast %182 : f32 to vector<16x16xf32>
      %185 = arith.mulf %184, %183 : vector<16x16xf32>
      %186 = arith.addf %181, %185 : vector<16x16xf32>
      %c30 = arith.constant 30 : index
      %187 = memref.load %arg2[%c30] : memref<98xf32, #tpu.memory_space<smem>>
      %188 = vector.extract_strided_slice %176 {offsets = [0, 2], sizes = [16, 16], strides = [1, 1]} : vector<16x22xf32> to vector<16x16xf32>
      %189 = vector.broadcast %187 : f32 to vector<16x16xf32>
      %190 = arith.mulf %189, %188 : vector<16x16xf32>
      %191 = arith.addf %186, %190 : vector<16x16xf32>
      %c31 = arith.constant 31 : index
      %192 = memref.load %arg2[%c31] : memref<98xf32, #tpu.memory_space<smem>>
      %193 = vector.extract_strided_slice %176 {offsets = [0, 3], sizes = [16, 16], strides = [1, 1]} : vector<16x22xf32> to vector<16x16xf32>
      %194 = vector.broadcast %192 : f32 to vector<16x16xf32>
      %195 = arith.mulf %194, %193 : vector<16x16xf32>
      %196 = arith.addf %191, %195 : vector<16x16xf32>
      %c32 = arith.constant 32 : index
      %197 = memref.load %arg2[%c32] : memref<98xf32, #tpu.memory_space<smem>>
      %198 = vector.extract_strided_slice %176 {offsets = [0, 4], sizes = [16, 16], strides = [1, 1]} : vector<16x22xf32> to vector<16x16xf32>
      %199 = vector.broadcast %197 : f32 to vector<16x16xf32>
      %200 = arith.mulf %199, %198 : vector<16x16xf32>
      %201 = arith.addf %196, %200 : vector<16x16xf32>
      %c33 = arith.constant 33 : index
      %202 = memref.load %arg2[%c33] : memref<98xf32, #tpu.memory_space<smem>>
      %203 = vector.extract_strided_slice %176 {offsets = [0, 5], sizes = [16, 16], strides = [1, 1]} : vector<16x22xf32> to vector<16x16xf32>
      %204 = vector.broadcast %202 : f32 to vector<16x16xf32>
      %205 = arith.mulf %204, %203 : vector<16x16xf32>
      %206 = arith.addf %201, %205 : vector<16x16xf32>
      %c34 = arith.constant 34 : index
      %207 = memref.load %arg2[%c34] : memref<98xf32, #tpu.memory_space<smem>>
      %208 = vector.extract_strided_slice %176 {offsets = [0, 6], sizes = [16, 16], strides = [1, 1]} : vector<16x22xf32> to vector<16x16xf32>
      %209 = vector.broadcast %207 : f32 to vector<16x16xf32>
      %210 = arith.mulf %209, %208 : vector<16x16xf32>
      %211 = arith.addf %206, %210 : vector<16x16xf32>
      %c0_43 = arith.constant 0 : index
      %c5_44 = arith.constant 5 : index
      %c0_45 = arith.constant 0 : index
      %212 = vector.load %arg7[%c0_43, %c5_44, %c0_45] : memref<2x22x22xf32, #tpu.memory_space<vmem>>, vector<1x16x22xf32>
      %213 = vector.shape_cast %212 : vector<1x16x22xf32> to vector<16x22xf32>
      %c35 = arith.constant 35 : index
      %214 = memref.load %arg2[%c35] : memref<98xf32, #tpu.memory_space<smem>>
      %215 = vector.extract_strided_slice %213 {offsets = [0, 0], sizes = [16, 16], strides = [1, 1]} : vector<16x22xf32> to vector<16x16xf32>
      %216 = vector.broadcast %214 : f32 to vector<16x16xf32>
      %217 = arith.mulf %216, %215 : vector<16x16xf32>
      %218 = arith.addf %211, %217 : vector<16x16xf32>
      %c36 = arith.constant 36 : index
      %219 = memref.load %arg2[%c36] : memref<98xf32, #tpu.memory_space<smem>>
      %220 = vector.extract_strided_slice %213 {offsets = [0, 1], sizes = [16, 16], strides = [1, 1]} : vector<16x22xf32> to vector<16x16xf32>
      %221 = vector.broadcast %219 : f32 to vector<16x16xf32>
      %222 = arith.mulf %221, %220 : vector<16x16xf32>
      %223 = arith.addf %218, %222 : vector<16x16xf32>
      %c37 = arith.constant 37 : index
      %224 = memref.load %arg2[%c37] : memref<98xf32, #tpu.memory_space<smem>>
      %225 = vector.extract_strided_slice %213 {offsets = [0, 2], sizes = [16, 16], strides = [1, 1]} : vector<16x22xf32> to vector<16x16xf32>
      %226 = vector.broadcast %224 : f32 to vector<16x16xf32>
      %227 = arith.mulf %226, %225 : vector<16x16xf32>
      %228 = arith.addf %223, %227 : vector<16x16xf32>
      %c38 = arith.constant 38 : index
      %229 = memref.load %arg2[%c38] : memref<98xf32, #tpu.memory_space<smem>>
      %230 = vector.extract_strided_slice %213 {offsets = [0, 3], sizes = [16, 16], strides = [1, 1]} : vector<16x22xf32> to vector<16x16xf32>
      %231 = vector.broadcast %229 : f32 to vector<16x16xf32>
      %232 = arith.mulf %231, %230 : vector<16x16xf32>
      %233 = arith.addf %228, %232 : vector<16x16xf32>
      %c39 = arith.constant 39 : index
      %234 = memref.load %arg2[%c39] : memref<98xf32, #tpu.memory_space<smem>>
      %235 = vector.extract_strided_slice %213 {offsets = [0, 4], sizes = [16, 16], strides = [1, 1]} : vector<16x22xf32> to vector<16x16xf32>
      %236 = vector.broadcast %234 : f32 to vector<16x16xf32>
      %237 = arith.mulf %236, %235 : vector<16x16xf32>
      %238 = arith.addf %233, %237 : vector<16x16xf32>
      %c40 = arith.constant 40 : index
      %239 = memref.load %arg2[%c40] : memref<98xf32, #tpu.memory_space<smem>>
      %240 = vector.extract_strided_slice %213 {offsets = [0, 5], sizes = [16, 16], strides = [1, 1]} : vector<16x22xf32> to vector<16x16xf32>
      %241 = vector.broadcast %239 : f32 to vector<16x16xf32>
      %242 = arith.mulf %241, %240 : vector<16x16xf32>
      %243 = arith.addf %238, %242 : vector<16x16xf32>
      %c41 = arith.constant 41 : index
      %244 = memref.load %arg2[%c41] : memref<98xf32, #tpu.memory_space<smem>>
      %245 = vector.extract_strided_slice %213 {offsets = [0, 6], sizes = [16, 16], strides = [1, 1]} : vector<16x22xf32> to vector<16x16xf32>
      %246 = vector.broadcast %244 : f32 to vector<16x16xf32>
      %247 = arith.mulf %246, %245 : vector<16x16xf32>
      %248 = arith.addf %243, %247 : vector<16x16xf32>
      %c0_46 = arith.constant 0 : index
      %c6_47 = arith.constant 6 : index
      %c0_48 = arith.constant 0 : index
      %249 = vector.load %arg7[%c0_46, %c6_47, %c0_48] : memref<2x22x22xf32, #tpu.memory_space<vmem>>, vector<1x16x22xf32>
      %250 = vector.shape_cast %249 : vector<1x16x22xf32> to vector<16x22xf32>
      %c42 = arith.constant 42 : index
      %251 = memref.load %arg2[%c42] : memref<98xf32, #tpu.memory_space<smem>>
      %252 = vector.extract_strided_slice %250 {offsets = [0, 0], sizes = [16, 16], strides = [1, 1]} : vector<16x22xf32> to vector<16x16xf32>
      %253 = vector.broadcast %251 : f32 to vector<16x16xf32>
      %254 = arith.mulf %253, %252 : vector<16x16xf32>
      %255 = arith.addf %248, %254 : vector<16x16xf32>
      %c43 = arith.constant 43 : index
      %256 = memref.load %arg2[%c43] : memref<98xf32, #tpu.memory_space<smem>>
      %257 = vector.extract_strided_slice %250 {offsets = [0, 1], sizes = [16, 16], strides = [1, 1]} : vector<16x22xf32> to vector<16x16xf32>
      %258 = vector.broadcast %256 : f32 to vector<16x16xf32>
      %259 = arith.mulf %258, %257 : vector<16x16xf32>
      %260 = arith.addf %255, %259 : vector<16x16xf32>
      %c44 = arith.constant 44 : index
      %261 = memref.load %arg2[%c44] : memref<98xf32, #tpu.memory_space<smem>>
      %262 = vector.extract_strided_slice %250 {offsets = [0, 2], sizes = [16, 16], strides = [1, 1]} : vector<16x22xf32> to vector<16x16xf32>
      %263 = vector.broadcast %261 : f32 to vector<16x16xf32>
      %264 = arith.mulf %263, %262 : vector<16x16xf32>
      %265 = arith.addf %260, %264 : vector<16x16xf32>
      %c45 = arith.constant 45 : index
      %266 = memref.load %arg2[%c45] : memref<98xf32, #tpu.memory_space<smem>>
      %267 = vector.extract_strided_slice %250 {offsets = [0, 3], sizes = [16, 16], strides = [1, 1]} : vector<16x22xf32> to vector<16x16xf32>
      %268 = vector.broadcast %266 : f32 to vector<16x16xf32>
      %269 = arith.mulf %268, %267 : vector<16x16xf32>
      %270 = arith.addf %265, %269 : vector<16x16xf32>
      %c46 = arith.constant 46 : index
      %271 = memref.load %arg2[%c46] : memref<98xf32, #tpu.memory_space<smem>>
      %272 = vector.extract_strided_slice %250 {offsets = [0, 4], sizes = [16, 16], strides = [1, 1]} : vector<16x22xf32> to vector<16x16xf32>
      %273 = vector.broadcast %271 : f32 to vector<16x16xf32>
      %274 = arith.mulf %273, %272 : vector<16x16xf32>
      %275 = arith.addf %270, %274 : vector<16x16xf32>
      %c47 = arith.constant 47 : index
      %276 = memref.load %arg2[%c47] : memref<98xf32, #tpu.memory_space<smem>>
      %277 = vector.extract_strided_slice %250 {offsets = [0, 5], sizes = [16, 16], strides = [1, 1]} : vector<16x22xf32> to vector<16x16xf32>
      %278 = vector.broadcast %276 : f32 to vector<16x16xf32>
      %279 = arith.mulf %278, %277 : vector<16x16xf32>
      %280 = arith.addf %275, %279 : vector<16x16xf32>
      %c48 = arith.constant 48 : index
      %281 = memref.load %arg2[%c48] : memref<98xf32, #tpu.memory_space<smem>>
      %282 = vector.extract_strided_slice %250 {offsets = [0, 6], sizes = [16, 16], strides = [1, 1]} : vector<16x22xf32> to vector<16x16xf32>
      %283 = vector.broadcast %281 : f32 to vector<16x16xf32>
      %284 = arith.mulf %283, %282 : vector<16x16xf32>
      %285 = arith.addf %280, %284 : vector<16x16xf32>
      %c1_49 = arith.constant 1 : index
      %c0_50 = arith.constant 0 : index
      %c0_51 = arith.constant 0 : index
      %286 = vector.load %arg7[%c1_49, %c0_50, %c0_51] : memref<2x22x22xf32, #tpu.memory_space<vmem>>, vector<1x16x22xf32>
      %287 = vector.shape_cast %286 : vector<1x16x22xf32> to vector<16x22xf32>
      %c49 = arith.constant 49 : index
      %288 = memref.load %arg2[%c49] : memref<98xf32, #tpu.memory_space<smem>>
      %289 = vector.extract_strided_slice %287 {offsets = [0, 0], sizes = [16, 16], strides = [1, 1]} : vector<16x22xf32> to vector<16x16xf32>
      %290 = vector.broadcast %288 : f32 to vector<16x16xf32>
      %291 = arith.mulf %290, %289 : vector<16x16xf32>
      %292 = arith.addf %285, %291 : vector<16x16xf32>
      %c50 = arith.constant 50 : index
      %293 = memref.load %arg2[%c50] : memref<98xf32, #tpu.memory_space<smem>>
      %294 = vector.extract_strided_slice %287 {offsets = [0, 1], sizes = [16, 16], strides = [1, 1]} : vector<16x22xf32> to vector<16x16xf32>
      %295 = vector.broadcast %293 : f32 to vector<16x16xf32>
      %296 = arith.mulf %295, %294 : vector<16x16xf32>
      %297 = arith.addf %292, %296 : vector<16x16xf32>
      %c51 = arith.constant 51 : index
      %298 = memref.load %arg2[%c51] : memref<98xf32, #tpu.memory_space<smem>>
      %299 = vector.extract_strided_slice %287 {offsets = [0, 2], sizes = [16, 16], strides = [1, 1]} : vector<16x22xf32> to vector<16x16xf32>
      %300 = vector.broadcast %298 : f32 to vector<16x16xf32>
      %301 = arith.mulf %300, %299 : vector<16x16xf32>
      %302 = arith.addf %297, %301 : vector<16x16xf32>
      %c52 = arith.constant 52 : index
      %303 = memref.load %arg2[%c52] : memref<98xf32, #tpu.memory_space<smem>>
      %304 = vector.extract_strided_slice %287 {offsets = [0, 3], sizes = [16, 16], strides = [1, 1]} : vector<16x22xf32> to vector<16x16xf32>
      %305 = vector.broadcast %303 : f32 to vector<16x16xf32>
      %306 = arith.mulf %305, %304 : vector<16x16xf32>
      %307 = arith.addf %302, %306 : vector<16x16xf32>
      %c53 = arith.constant 53 : index
      %308 = memref.load %arg2[%c53] : memref<98xf32, #tpu.memory_space<smem>>
      %309 = vector.extract_strided_slice %287 {offsets = [0, 4], sizes = [16, 16], strides = [1, 1]} : vector<16x22xf32> to vector<16x16xf32>
      %310 = vector.broadcast %308 : f32 to vector<16x16xf32>
      %311 = arith.mulf %310, %309 : vector<16x16xf32>
      %312 = arith.addf %307, %311 : vector<16x16xf32>
      %c54 = arith.constant 54 : index
      %313 = memref.load %arg2[%c54] : memref<98xf32, #tpu.memory_space<smem>>
      %314 = vector.extract_strided_slice %287 {offsets = [0, 5], sizes = [16, 16], strides = [1, 1]} : vector<16x22xf32> to vector<16x16xf32>
      %315 = vector.broadcast %313 : f32 to vector<16x16xf32>
      %316 = arith.mulf %315, %314 : vector<16x16xf32>
      %317 = arith.addf %312, %316 : vector<16x16xf32>
      %c55 = arith.constant 55 : index
      %318 = memref.load %arg2[%c55] : memref<98xf32, #tpu.memory_space<smem>>
      %319 = vector.extract_strided_slice %287 {offsets = [0, 6], sizes = [16, 16], strides = [1, 1]} : vector<16x22xf32> to vector<16x16xf32>
      %320 = vector.broadcast %318 : f32 to vector<16x16xf32>
      %321 = arith.mulf %320, %319 : vector<16x16xf32>
      %322 = arith.addf %317, %321 : vector<16x16xf32>
      %c1_52 = arith.constant 1 : index
      %c1_53 = arith.constant 1 : index
      %c0_54 = arith.constant 0 : index
      %323 = vector.load %arg7[%c1_52, %c1_53, %c0_54] : memref<2x22x22xf32, #tpu.memory_space<vmem>>, vector<1x16x22xf32>
      %324 = vector.shape_cast %323 : vector<1x16x22xf32> to vector<16x22xf32>
      %c56 = arith.constant 56 : index
      %325 = memref.load %arg2[%c56] : memref<98xf32, #tpu.memory_space<smem>>
      %326 = vector.extract_strided_slice %324 {offsets = [0, 0], sizes = [16, 16], strides = [1, 1]} : vector<16x22xf32> to vector<16x16xf32>
      %327 = vector.broadcast %325 : f32 to vector<16x16xf32>
      %328 = arith.mulf %327, %326 : vector<16x16xf32>
      %329 = arith.addf %322, %328 : vector<16x16xf32>
      %c57 = arith.constant 57 : index
      %330 = memref.load %arg2[%c57] : memref<98xf32, #tpu.memory_space<smem>>
      %331 = vector.extract_strided_slice %324 {offsets = [0, 1], sizes = [16, 16], strides = [1, 1]} : vector<16x22xf32> to vector<16x16xf32>
      %332 = vector.broadcast %330 : f32 to vector<16x16xf32>
      %333 = arith.mulf %332, %331 : vector<16x16xf32>
      %334 = arith.addf %329, %333 : vector<16x16xf32>
      %c58 = arith.constant 58 : index
      %335 = memref.load %arg2[%c58] : memref<98xf32, #tpu.memory_space<smem>>
      %336 = vector.extract_strided_slice %324 {offsets = [0, 2], sizes = [16, 16], strides = [1, 1]} : vector<16x22xf32> to vector<16x16xf32>
      %337 = vector.broadcast %335 : f32 to vector<16x16xf32>
      %338 = arith.mulf %337, %336 : vector<16x16xf32>
      %339 = arith.addf %334, %338 : vector<16x16xf32>
      %c59 = arith.constant 59 : index
      %340 = memref.load %arg2[%c59] : memref<98xf32, #tpu.memory_space<smem>>
      %341 = vector.extract_strided_slice %324 {offsets = [0, 3], sizes = [16, 16], strides = [1, 1]} : vector<16x22xf32> to vector<16x16xf32>
      %342 = vector.broadcast %340 : f32 to vector<16x16xf32>
      %343 = arith.mulf %342, %341 : vector<16x16xf32>
      %344 = arith.addf %339, %343 : vector<16x16xf32>
      %c60 = arith.constant 60 : index
      %345 = memref.load %arg2[%c60] : memref<98xf32, #tpu.memory_space<smem>>
      %346 = vector.extract_strided_slice %324 {offsets = [0, 4], sizes = [16, 16], strides = [1, 1]} : vector<16x22xf32> to vector<16x16xf32>
      %347 = vector.broadcast %345 : f32 to vector<16x16xf32>
      %348 = arith.mulf %347, %346 : vector<16x16xf32>
      %349 = arith.addf %344, %348 : vector<16x16xf32>
      %c61 = arith.constant 61 : index
      %350 = memref.load %arg2[%c61] : memref<98xf32, #tpu.memory_space<smem>>
      %351 = vector.extract_strided_slice %324 {offsets = [0, 5], sizes = [16, 16], strides = [1, 1]} : vector<16x22xf32> to vector<16x16xf32>
      %352 = vector.broadcast %350 : f32 to vector<16x16xf32>
      %353 = arith.mulf %352, %351 : vector<16x16xf32>
      %354 = arith.addf %349, %353 : vector<16x16xf32>
      %c62 = arith.constant 62 : index
      %355 = memref.load %arg2[%c62] : memref<98xf32, #tpu.memory_space<smem>>
      %356 = vector.extract_strided_slice %324 {offsets = [0, 6], sizes = [16, 16], strides = [1, 1]} : vector<16x22xf32> to vector<16x16xf32>
      %357 = vector.broadcast %355 : f32 to vector<16x16xf32>
      %358 = arith.mulf %357, %356 : vector<16x16xf32>
      %359 = arith.addf %354, %358 : vector<16x16xf32>
      %c1_55 = arith.constant 1 : index
      %c2_56 = arith.constant 2 : index
      %c0_57 = arith.constant 0 : index
      %360 = vector.load %arg7[%c1_55, %c2_56, %c0_57] : memref<2x22x22xf32, #tpu.memory_space<vmem>>, vector<1x16x22xf32>
      %361 = vector.shape_cast %360 : vector<1x16x22xf32> to vector<16x22xf32>
      %c63 = arith.constant 63 : index
      %362 = memref.load %arg2[%c63] : memref<98xf32, #tpu.memory_space<smem>>
      %363 = vector.extract_strided_slice %361 {offsets = [0, 0], sizes = [16, 16], strides = [1, 1]} : vector<16x22xf32> to vector<16x16xf32>
      %364 = vector.broadcast %362 : f32 to vector<16x16xf32>
      %365 = arith.mulf %364, %363 : vector<16x16xf32>
      %366 = arith.addf %359, %365 : vector<16x16xf32>
      %c64 = arith.constant 64 : index
      %367 = memref.load %arg2[%c64] : memref<98xf32, #tpu.memory_space<smem>>
      %368 = vector.extract_strided_slice %361 {offsets = [0, 1], sizes = [16, 16], strides = [1, 1]} : vector<16x22xf32> to vector<16x16xf32>
      %369 = vector.broadcast %367 : f32 to vector<16x16xf32>
      %370 = arith.mulf %369, %368 : vector<16x16xf32>
      %371 = arith.addf %366, %370 : vector<16x16xf32>
      %c65 = arith.constant 65 : index
      %372 = memref.load %arg2[%c65] : memref<98xf32, #tpu.memory_space<smem>>
      %373 = vector.extract_strided_slice %361 {offsets = [0, 2], sizes = [16, 16], strides = [1, 1]} : vector<16x22xf32> to vector<16x16xf32>
      %374 = vector.broadcast %372 : f32 to vector<16x16xf32>
      %375 = arith.mulf %374, %373 : vector<16x16xf32>
      %376 = arith.addf %371, %375 : vector<16x16xf32>
      %c66 = arith.constant 66 : index
      %377 = memref.load %arg2[%c66] : memref<98xf32, #tpu.memory_space<smem>>
      %378 = vector.extract_strided_slice %361 {offsets = [0, 3], sizes = [16, 16], strides = [1, 1]} : vector<16x22xf32> to vector<16x16xf32>
      %379 = vector.broadcast %377 : f32 to vector<16x16xf32>
      %380 = arith.mulf %379, %378 : vector<16x16xf32>
      %381 = arith.addf %376, %380 : vector<16x16xf32>
      %c67 = arith.constant 67 : index
      %382 = memref.load %arg2[%c67] : memref<98xf32, #tpu.memory_space<smem>>
      %383 = vector.extract_strided_slice %361 {offsets = [0, 4], sizes = [16, 16], strides = [1, 1]} : vector<16x22xf32> to vector<16x16xf32>
      %384 = vector.broadcast %382 : f32 to vector<16x16xf32>
      %385 = arith.mulf %384, %383 : vector<16x16xf32>
      %386 = arith.addf %381, %385 : vector<16x16xf32>
      %c68 = arith.constant 68 : index
      %387 = memref.load %arg2[%c68] : memref<98xf32, #tpu.memory_space<smem>>
      %388 = vector.extract_strided_slice %361 {offsets = [0, 5], sizes = [16, 16], strides = [1, 1]} : vector<16x22xf32> to vector<16x16xf32>
      %389 = vector.broadcast %387 : f32 to vector<16x16xf32>
      %390 = arith.mulf %389, %388 : vector<16x16xf32>
      %391 = arith.addf %386, %390 : vector<16x16xf32>
      %c69 = arith.constant 69 : index
      %392 = memref.load %arg2[%c69] : memref<98xf32, #tpu.memory_space<smem>>
      %393 = vector.extract_strided_slice %361 {offsets = [0, 6], sizes = [16, 16], strides = [1, 1]} : vector<16x22xf32> to vector<16x16xf32>
      %394 = vector.broadcast %392 : f32 to vector<16x16xf32>
      %395 = arith.mulf %394, %393 : vector<16x16xf32>
      %396 = arith.addf %391, %395 : vector<16x16xf32>
      %c1_58 = arith.constant 1 : index
      %c3_59 = arith.constant 3 : index
      %c0_60 = arith.constant 0 : index
      %397 = vector.load %arg7[%c1_58, %c3_59, %c0_60] : memref<2x22x22xf32, #tpu.memory_space<vmem>>, vector<1x16x22xf32>
      %398 = vector.shape_cast %397 : vector<1x16x22xf32> to vector<16x22xf32>
      %c70 = arith.constant 70 : index
      %399 = memref.load %arg2[%c70] : memref<98xf32, #tpu.memory_space<smem>>
      %400 = vector.extract_strided_slice %398 {offsets = [0, 0], sizes = [16, 16], strides = [1, 1]} : vector<16x22xf32> to vector<16x16xf32>
      %401 = vector.broadcast %399 : f32 to vector<16x16xf32>
      %402 = arith.mulf %401, %400 : vector<16x16xf32>
      %403 = arith.addf %396, %402 : vector<16x16xf32>
      %c71 = arith.constant 71 : index
      %404 = memref.load %arg2[%c71] : memref<98xf32, #tpu.memory_space<smem>>
      %405 = vector.extract_strided_slice %398 {offsets = [0, 1], sizes = [16, 16], strides = [1, 1]} : vector<16x22xf32> to vector<16x16xf32>
      %406 = vector.broadcast %404 : f32 to vector<16x16xf32>
      %407 = arith.mulf %406, %405 : vector<16x16xf32>
      %408 = arith.addf %403, %407 : vector<16x16xf32>
      %c72 = arith.constant 72 : index
      %409 = memref.load %arg2[%c72] : memref<98xf32, #tpu.memory_space<smem>>
      %410 = vector.extract_strided_slice %398 {offsets = [0, 2], sizes = [16, 16], strides = [1, 1]} : vector<16x22xf32> to vector<16x16xf32>
      %411 = vector.broadcast %409 : f32 to vector<16x16xf32>
      %412 = arith.mulf %411, %410 : vector<16x16xf32>
      %413 = arith.addf %408, %412 : vector<16x16xf32>
      %c73 = arith.constant 73 : index
      %414 = memref.load %arg2[%c73] : memref<98xf32, #tpu.memory_space<smem>>
      %415 = vector.extract_strided_slice %398 {offsets = [0, 3], sizes = [16, 16], strides = [1, 1]} : vector<16x22xf32> to vector<16x16xf32>
      %416 = vector.broadcast %414 : f32 to vector<16x16xf32>
      %417 = arith.mulf %416, %415 : vector<16x16xf32>
      %418 = arith.addf %413, %417 : vector<16x16xf32>
      %c74 = arith.constant 74 : index
      %419 = memref.load %arg2[%c74] : memref<98xf32, #tpu.memory_space<smem>>
      %420 = vector.extract_strided_slice %398 {offsets = [0, 4], sizes = [16, 16], strides = [1, 1]} : vector<16x22xf32> to vector<16x16xf32>
      %421 = vector.broadcast %419 : f32 to vector<16x16xf32>
      %422 = arith.mulf %421, %420 : vector<16x16xf32>
      %423 = arith.addf %418, %422 : vector<16x16xf32>
      %c75 = arith.constant 75 : index
      %424 = memref.load %arg2[%c75] : memref<98xf32, #tpu.memory_space<smem>>
      %425 = vector.extract_strided_slice %398 {offsets = [0, 5], sizes = [16, 16], strides = [1, 1]} : vector<16x22xf32> to vector<16x16xf32>
      %426 = vector.broadcast %424 : f32 to vector<16x16xf32>
      %427 = arith.mulf %426, %425 : vector<16x16xf32>
      %428 = arith.addf %423, %427 : vector<16x16xf32>
      %c76 = arith.constant 76 : index
      %429 = memref.load %arg2[%c76] : memref<98xf32, #tpu.memory_space<smem>>
      %430 = vector.extract_strided_slice %398 {offsets = [0, 6], sizes = [16, 16], strides = [1, 1]} : vector<16x22xf32> to vector<16x16xf32>
      %431 = vector.broadcast %429 : f32 to vector<16x16xf32>
      %432 = arith.mulf %431, %430 : vector<16x16xf32>
      %433 = arith.addf %428, %432 : vector<16x16xf32>
      %c1_61 = arith.constant 1 : index
      %c4_62 = arith.constant 4 : index
      %c0_63 = arith.constant 0 : index
      %434 = vector.load %arg7[%c1_61, %c4_62, %c0_63] : memref<2x22x22xf32, #tpu.memory_space<vmem>>, vector<1x16x22xf32>
      %435 = vector.shape_cast %434 : vector<1x16x22xf32> to vector<16x22xf32>
      %c77 = arith.constant 77 : index
      %436 = memref.load %arg2[%c77] : memref<98xf32, #tpu.memory_space<smem>>
      %437 = vector.extract_strided_slice %435 {offsets = [0, 0], sizes = [16, 16], strides = [1, 1]} : vector<16x22xf32> to vector<16x16xf32>
      %438 = vector.broadcast %436 : f32 to vector<16x16xf32>
      %439 = arith.mulf %438, %437 : vector<16x16xf32>
      %440 = arith.addf %433, %439 : vector<16x16xf32>
      %c78 = arith.constant 78 : index
      %441 = memref.load %arg2[%c78] : memref<98xf32, #tpu.memory_space<smem>>
      %442 = vector.extract_strided_slice %435 {offsets = [0, 1], sizes = [16, 16], strides = [1, 1]} : vector<16x22xf32> to vector<16x16xf32>
      %443 = vector.broadcast %441 : f32 to vector<16x16xf32>
      %444 = arith.mulf %443, %442 : vector<16x16xf32>
      %445 = arith.addf %440, %444 : vector<16x16xf32>
      %c79 = arith.constant 79 : index
      %446 = memref.load %arg2[%c79] : memref<98xf32, #tpu.memory_space<smem>>
      %447 = vector.extract_strided_slice %435 {offsets = [0, 2], sizes = [16, 16], strides = [1, 1]} : vector<16x22xf32> to vector<16x16xf32>
      %448 = vector.broadcast %446 : f32 to vector<16x16xf32>
      %449 = arith.mulf %448, %447 : vector<16x16xf32>
      %450 = arith.addf %445, %449 : vector<16x16xf32>
      %c80 = arith.constant 80 : index
      %451 = memref.load %arg2[%c80] : memref<98xf32, #tpu.memory_space<smem>>
      %452 = vector.extract_strided_slice %435 {offsets = [0, 3], sizes = [16, 16], strides = [1, 1]} : vector<16x22xf32> to vector<16x16xf32>
      %453 = vector.broadcast %451 : f32 to vector<16x16xf32>
      %454 = arith.mulf %453, %452 : vector<16x16xf32>
      %455 = arith.addf %450, %454 : vector<16x16xf32>
      %c81 = arith.constant 81 : index
      %456 = memref.load %arg2[%c81] : memref<98xf32, #tpu.memory_space<smem>>
      %457 = vector.extract_strided_slice %435 {offsets = [0, 4], sizes = [16, 16], strides = [1, 1]} : vector<16x22xf32> to vector<16x16xf32>
      %458 = vector.broadcast %456 : f32 to vector<16x16xf32>
      %459 = arith.mulf %458, %457 : vector<16x16xf32>
      %460 = arith.addf %455, %459 : vector<16x16xf32>
      %c82 = arith.constant 82 : index
      %461 = memref.load %arg2[%c82] : memref<98xf32, #tpu.memory_space<smem>>
      %462 = vector.extract_strided_slice %435 {offsets = [0, 5], sizes = [16, 16], strides = [1, 1]} : vector<16x22xf32> to vector<16x16xf32>
      %463 = vector.broadcast %461 : f32 to vector<16x16xf32>
      %464 = arith.mulf %463, %462 : vector<16x16xf32>
      %465 = arith.addf %460, %464 : vector<16x16xf32>
      %c83 = arith.constant 83 : index
      %466 = memref.load %arg2[%c83] : memref<98xf32, #tpu.memory_space<smem>>
      %467 = vector.extract_strided_slice %435 {offsets = [0, 6], sizes = [16, 16], strides = [1, 1]} : vector<16x22xf32> to vector<16x16xf32>
      %468 = vector.broadcast %466 : f32 to vector<16x16xf32>
      %469 = arith.mulf %468, %467 : vector<16x16xf32>
      %470 = arith.addf %465, %469 : vector<16x16xf32>
      %c1_64 = arith.constant 1 : index
      %c5_65 = arith.constant 5 : index
      %c0_66 = arith.constant 0 : index
      %471 = vector.load %arg7[%c1_64, %c5_65, %c0_66] : memref<2x22x22xf32, #tpu.memory_space<vmem>>, vector<1x16x22xf32>
      %472 = vector.shape_cast %471 : vector<1x16x22xf32> to vector<16x22xf32>
      %c84 = arith.constant 84 : index
      %473 = memref.load %arg2[%c84] : memref<98xf32, #tpu.memory_space<smem>>
      %474 = vector.extract_strided_slice %472 {offsets = [0, 0], sizes = [16, 16], strides = [1, 1]} : vector<16x22xf32> to vector<16x16xf32>
      %475 = vector.broadcast %473 : f32 to vector<16x16xf32>
      %476 = arith.mulf %475, %474 : vector<16x16xf32>
      %477 = arith.addf %470, %476 : vector<16x16xf32>
      %c85 = arith.constant 85 : index
      %478 = memref.load %arg2[%c85] : memref<98xf32, #tpu.memory_space<smem>>
      %479 = vector.extract_strided_slice %472 {offsets = [0, 1], sizes = [16, 16], strides = [1, 1]} : vector<16x22xf32> to vector<16x16xf32>
      %480 = vector.broadcast %478 : f32 to vector<16x16xf32>
      %481 = arith.mulf %480, %479 : vector<16x16xf32>
      %482 = arith.addf %477, %481 : vector<16x16xf32>
      %c86 = arith.constant 86 : index
      %483 = memref.load %arg2[%c86] : memref<98xf32, #tpu.memory_space<smem>>
      %484 = vector.extract_strided_slice %472 {offsets = [0, 2], sizes = [16, 16], strides = [1, 1]} : vector<16x22xf32> to vector<16x16xf32>
      %485 = vector.broadcast %483 : f32 to vector<16x16xf32>
      %486 = arith.mulf %485, %484 : vector<16x16xf32>
      %487 = arith.addf %482, %486 : vector<16x16xf32>
      %c87 = arith.constant 87 : index
      %488 = memref.load %arg2[%c87] : memref<98xf32, #tpu.memory_space<smem>>
      %489 = vector.extract_strided_slice %472 {offsets = [0, 3], sizes = [16, 16], strides = [1, 1]} : vector<16x22xf32> to vector<16x16xf32>
      %490 = vector.broadcast %488 : f32 to vector<16x16xf32>
      %491 = arith.mulf %490, %489 : vector<16x16xf32>
      %492 = arith.addf %487, %491 : vector<16x16xf32>
      %c88 = arith.constant 88 : index
      %493 = memref.load %arg2[%c88] : memref<98xf32, #tpu.memory_space<smem>>
      %494 = vector.extract_strided_slice %472 {offsets = [0, 4], sizes = [16, 16], strides = [1, 1]} : vector<16x22xf32> to vector<16x16xf32>
      %495 = vector.broadcast %493 : f32 to vector<16x16xf32>
      %496 = arith.mulf %495, %494 : vector<16x16xf32>
      %497 = arith.addf %492, %496 : vector<16x16xf32>
      %c89 = arith.constant 89 : index
      %498 = memref.load %arg2[%c89] : memref<98xf32, #tpu.memory_space<smem>>
      %499 = vector.extract_strided_slice %472 {offsets = [0, 5], sizes = [16, 16], strides = [1, 1]} : vector<16x22xf32> to vector<16x16xf32>
      %500 = vector.broadcast %498 : f32 to vector<16x16xf32>
      %501 = arith.mulf %500, %499 : vector<16x16xf32>
      %502 = arith.addf %497, %501 : vector<16x16xf32>
      %c90 = arith.constant 90 : index
      %503 = memref.load %arg2[%c90] : memref<98xf32, #tpu.memory_space<smem>>
      %504 = vector.extract_strided_slice %472 {offsets = [0, 6], sizes = [16, 16], strides = [1, 1]} : vector<16x22xf32> to vector<16x16xf32>
      %505 = vector.broadcast %503 : f32 to vector<16x16xf32>
      %506 = arith.mulf %505, %504 : vector<16x16xf32>
      %507 = arith.addf %502, %506 : vector<16x16xf32>
      %c1_67 = arith.constant 1 : index
      %c6_68 = arith.constant 6 : index
      %c0_69 = arith.constant 0 : index
      %508 = vector.load %arg7[%c1_67, %c6_68, %c0_69] : memref<2x22x22xf32, #tpu.memory_space<vmem>>, vector<1x16x22xf32>
      %509 = vector.shape_cast %508 : vector<1x16x22xf32> to vector<16x22xf32>
      %c91 = arith.constant 91 : index
      %510 = memref.load %arg2[%c91] : memref<98xf32, #tpu.memory_space<smem>>
      %511 = vector.extract_strided_slice %509 {offsets = [0, 0], sizes = [16, 16], strides = [1, 1]} : vector<16x22xf32> to vector<16x16xf32>
      %512 = vector.broadcast %510 : f32 to vector<16x16xf32>
      %513 = arith.mulf %512, %511 : vector<16x16xf32>
      %514 = arith.addf %507, %513 : vector<16x16xf32>
      %c92 = arith.constant 92 : index
      %515 = memref.load %arg2[%c92] : memref<98xf32, #tpu.memory_space<smem>>
      %516 = vector.extract_strided_slice %509 {offsets = [0, 1], sizes = [16, 16], strides = [1, 1]} : vector<16x22xf32> to vector<16x16xf32>
      %517 = vector.broadcast %515 : f32 to vector<16x16xf32>
      %518 = arith.mulf %517, %516 : vector<16x16xf32>
      %519 = arith.addf %514, %518 : vector<16x16xf32>
      %c93 = arith.constant 93 : index
      %520 = memref.load %arg2[%c93] : memref<98xf32, #tpu.memory_space<smem>>
      %521 = vector.extract_strided_slice %509 {offsets = [0, 2], sizes = [16, 16], strides = [1, 1]} : vector<16x22xf32> to vector<16x16xf32>
      %522 = vector.broadcast %520 : f32 to vector<16x16xf32>
      %523 = arith.mulf %522, %521 : vector<16x16xf32>
      %524 = arith.addf %519, %523 : vector<16x16xf32>
      %c94 = arith.constant 94 : index
      %525 = memref.load %arg2[%c94] : memref<98xf32, #tpu.memory_space<smem>>
      %526 = vector.extract_strided_slice %509 {offsets = [0, 3], sizes = [16, 16], strides = [1, 1]} : vector<16x22xf32> to vector<16x16xf32>
      %527 = vector.broadcast %525 : f32 to vector<16x16xf32>
      %528 = arith.mulf %527, %526 : vector<16x16xf32>
      %529 = arith.addf %524, %528 : vector<16x16xf32>
      %c95 = arith.constant 95 : index
      %530 = memref.load %arg2[%c95] : memref<98xf32, #tpu.memory_space<smem>>
      %531 = vector.extract_strided_slice %509 {offsets = [0, 4], sizes = [16, 16], strides = [1, 1]} : vector<16x22xf32> to vector<16x16xf32>
      %532 = vector.broadcast %530 : f32 to vector<16x16xf32>
      %533 = arith.mulf %532, %531 : vector<16x16xf32>
      %534 = arith.addf %529, %533 : vector<16x16xf32>
      %c96 = arith.constant 96 : index
      %535 = memref.load %arg2[%c96] : memref<98xf32, #tpu.memory_space<smem>>
      %536 = vector.extract_strided_slice %509 {offsets = [0, 5], sizes = [16, 16], strides = [1, 1]} : vector<16x22xf32> to vector<16x16xf32>
      %537 = vector.broadcast %535 : f32 to vector<16x16xf32>
      %538 = arith.mulf %537, %536 : vector<16x16xf32>
      %539 = arith.addf %534, %538 : vector<16x16xf32>
      %c97 = arith.constant 97 : index
      %540 = memref.load %arg2[%c97] : memref<98xf32, #tpu.memory_space<smem>>
      %541 = vector.extract_strided_slice %509 {offsets = [0, 6], sizes = [16, 16], strides = [1, 1]} : vector<16x22xf32> to vector<16x16xf32>
      %542 = vector.broadcast %540 : f32 to vector<16x16xf32>
      %543 = arith.mulf %542, %541 : vector<16x16xf32>
      %544 = arith.addf %539, %543 : vector<16x16xf32>
      %cst_70 = arith.constant 0.000000e+00 : f32
      %545 = vector.broadcast %cst_70 : f32 to vector<16x16xf32>
      %546 = arith.subf %545, %544 : vector<16x16xf32>
      %547 = math.exp %546 : vector<16x16xf32>
      %cst_71 = arith.constant 1.000000e+00 : f32
      %548 = vector.broadcast %cst_71 : f32 to vector<16x16xf32>
      %549 = arith.addf %548, %547 : vector<16x16xf32>
      %cst_72 = arith.constant 1.000000e+00 : f32
      %550 = vector.broadcast %cst_72 : f32 to vector<16x16xf32>
      %551 = arith.divf %550, %549 : vector<16x16xf32>
      %c0_73 = arith.constant 0 : index
      %c0_74 = arith.constant 0 : index
      %c0_75 = arith.constant 0 : index
      %c0_76 = arith.constant 0 : index
      %552 = vector.load %arg4[%c0_73, %c0_74, %c0_75, %c0_76] : memref<1x1x16x16xf32, #tpu.memory_space<vmem>>, vector<1x1x16x16xf32>
      %553 = vector.shape_cast %552 : vector<1x1x16x16xf32> to vector<16x16xf32>
      %554 = vector.shape_cast %551 : vector<16x16xf32> to vector<1x1x16x16xf32>
      tpu.vector_store %arg4[%c0_73, %c0_74, %c0_75, %c0_76], %554 {strides = array<i32>} : memref<1x1x16x16xf32, #tpu.memory_space<vmem>>, vector<1x1x16x16xf32>,
    } else {
    }
    return
  }
  func.func @transform_0(%arg0: i32, %arg1: i32) -> i32 {
    %c0_i32 = arith.constant 0 : i32
    %c0_i32_0 = arith.constant 0 : i32
    return %c0_i32 : i32
  }
  func.func @transform_1(%arg0: i32, %arg1: i32) -> (i32, i32, i32, i32) {
    %c0_i32 = arith.constant 0 : i32
    %c0_i32_0 = arith.constant 0 : i32
    %c0_i32_1 = arith.constant 0 : i32
    return %arg0, %arg1, %c0_i32, %c0_i32_0 : i32, i32, i32, i32
  }
  func.func @transform_2(%arg0: i32, %arg1: i32) -> (i32, i32, i32, i32) {
    %c0_i32 = arith.constant 0 : i32
    %c0_i32_0 = arith.constant 0 : i32
    %c0_i32_1 = arith.constant 0 : i32
    %c0_i32_2 = arith.constant 0 : i32
    return %arg0, %c0_i32, %c0_i32_0, %c0_i32_1 : i32, i32, i32, i32
  }
}

</mosaic_0001>

<llo_original>
// kernel: tpu_custom_call.1
$region0: #{tpu_custom_call.1}
  #allocation0 [shape = 'u32[]', space=smem, size = 0x4, offset = 0x4, fixed_abs, tag = 'smem constant byte address 0x4 - core index']
  #allocation1 [shape = 'u32[144,128]{1,0:T(1,128)}', space=vmem, size = 0x12000, scoped, tag = 'internal scratch']
  #allocation2 [shape = 'f32[16,16]{1,0:T(8,128)}', space=vmem, size = 0x2000, scoped, tag = 'scratch operand']
  #allocation3 [shape = 'f32[16,16]{1,0:T(8,128)}', space=vmem, size = 0x2000, scoped, tag = 'scratch operand']
  #allocation4 [shape = 'f32[2,22,22]{2,1,0:T(8,128)}', space=vmem, size = 0x6000, scoped, tag = 'scratch operand']
  %s0 = inlined_call_operand.hbm [shape: f32[98], index: 0, kind: input, shape index: {}]
  %s1 = inlined_call_operand.hbm [shape: f32[2,4,16,16], index: 1, kind: input, shape index: {}]
  %s2 = inlined_call_operand.hbm [shape: f32[2,1,16,16], index: 2, kind: output, shape index: {}]
  %s3 = sld [smem:[#allocation0]]
  $region57: #{tpu_custom_call.1} parent=0
    _
  %s5 = ssub.s32 1, %s3
  %s6 = scalar_select 0, %s5, %s3
  $region1: #{tpu_custom_call.1} parent=0
    #allocation5 [shape = 'u8[512]{0}', space=smem, size = 0x200, scoped, tag = 'input window, operand 0, single buffered']
    #allocation6 [shape = 's32[2]{0}', space=sflag, size = 0x8, scoped, tag = 'scoped memory for tpu_custom_call.1']
    #allocation7 [shape = 's32[2]{0}', space=sflag, size = 0x8, scoped, tag = 'scoped memory for tpu_custom_call.1']
    #allocation8 [shape = 's32[2]{0}', space=sflag, size = 0x8, scoped, tag = 'scoped memory for tpu_custom_call.1']
    #allocation9 [shape = 'u8[65536]{0}', space=vmem, size = 0x10000, scoped, tag = 'input window, operand 1']
    #allocation10 [shape = 'u8[16384]{0}', space=vmem, size = 0x4000, scoped, tag = 'output window, operand 0']
    %7 = vsyncpa [#allocation8], 0
    %8 = vsyncpa [#allocation6], 0
    %s9 = scalar_lea.sflag [#allocation6], 1
    %10 = vsyncpa %s9, 0
    %11 = vsyncpa [#allocation7], 0
    %s12 = scalar_lea.sflag [#allocation7], 1
    %13 = vsyncpa %s12, 0
    loop: start=0, step=1, limit=4
    $region2: #{tpu_custom_call.1} parent=1 // loop_pre_header
      _
    $region3: #{tpu_custom_call.1} parent=1 // loop_header
      %s15 = sphi 0, %s19
      %p16 = scmp.ge.s32.totalorder %s15, 4
      %s22 = sphi 0, %s34
      %s23 = sphi 0, %s30
      %s24 = sphi 0, %s22
      %s25 = sphi 0, %s23
      %s26 = sphi 0, %s24
      %s27 = sphi 0, %s25
      %s35 = sphi 0, %s35
      %s37 = sphi 0, %s35
      %s38 = sphi 0, %s37
      %s52 = sphi 0, %s38
      %s60 = sphi 0, %s62
      %s63 = sphi 0, %s60
      %s64 = sphi 0, %s63
      %s80 = sphi 0, %s64
      %s86 = sphi 0, %s88
      %s89 = sphi 0, %s86
      %s90 = sphi 0, %s89
      %s106 = sphi 0, %s90
    $region4: #{tpu_custom_call.1} parent=1 // loop_header_branch
      %18 = sbr.rel (%p16) target = $region8
    $region5: #{tpu_custom_call.1} parent=1 // loop_body
      %s20 = ssub.s32 %s15, 1
      %s21 = ssub.s32 %s15, 2
      %s28 = sadd.s32 1, %s23
      %p29 = scmp.ge.s32.totalorder %s28, 1
      %s30 = scalar_select %p29, 0, %s28
      %s31 = sadd.s32 1, %s22
      %s32 = scalar_select %p29, %s31, %s22
      %p33 = scmp.ge.s32.totalorder %s32, 2
      %s34 = scalar_select %p33, 0, %s32
      %s36 = sadd.s32 %s35, 1
      %p39 = scmp.eq.s32.totalorder %s15, 1
      %p40 = scmp.ne.s32.totalorder %s35, %s37
      %p41 = scmp.eq.s32.totalorder %s15, 0
      %p42 = por %p40, %p41
      %p43 = scmp.ne.s32.totalorder %s35, %s37
      %p44 = scmp.eq.s32.totalorder %s20, 1
      %p45 = por %p43, %p44
      %p46 = scmp.ne.s32.totalorder %s37, %s38
      %p47 = scmp.eq.s32.totalorder %s20, 0
      %p48 = por %p46, %p47
      %p49 = scmp.ne.s32.totalorder %s37, %s38
      %p50 = scmp.eq.s32.totalorder %s21, 1
      %p51 = por %p49, %p50
      %p53 = scmp.ne.s32.totalorder %s38, %s52
      %p54 = scmp.eq.s32.totalorder %s21, 0
      %p55 = por %p53, %p54
      %s56 = ssub.s32 %s22, %s34
      %s57 = ssub.s32 %s23, %s30
      %s58 = sor.u32 %s56, %s57
      %p59 = scmp.eq.s32.totalorder %s58, 0
      %s61 = sadd.s32 %s60, 1
      %s62 = scalar_select %p59, %s60, %s61
      %p65 = pneg %p59
      %p66 = scmp.eq.s32.totalorder %s15, 1
      %p67 = por %p65, %p66
      %p68 = scmp.ne.s32.totalorder %s60, %s63
      %p69 = scmp.eq.s32.totalorder %s15, 0
      %p70 = por %p68, %p69
      %p71 = scmp.ne.s32.totalorder %s60, %s63
      %p72 = scmp.eq.s32.totalorder %s20, 1
      %p73 = por %p71, %p72
      %p74 = scmp.ne.s32.totalorder %s63, %s64
      %p75 = scmp.eq.s32.totalorder %s20, 0
      %p76 = por %p74, %p75
      %p77 = scmp.ne.s32.totalorder %s63, %s64
      %p78 = scmp.eq.s32.totalorder %s21, 1
      %p79 = por %p77, %p78
      %p81 = scmp.ne.s32.totalorder %s64, %s80
      %p82 = scmp.eq.s32.totalorder %s21, 0
      %p83 = por %p81, %p82
      %s84 = ssub.s32 %s22, %s34
      %p85 = scmp.eq.s32.totalorder %s84, 0
      %s87 = sadd.s32 %s86, 1
      %s88 = scalar_select %p85, %s86, %s87
      %p91 = pneg %p85
      %p92 = scmp.eq.s32.totalorder %s15, 1
      %p93 = por %p91, %p92
      %p94 = scmp.ne.s32.totalorder %s86, %s89
      %p95 = scmp.eq.s32.totalorder %s15, 0
      %p96 = por %p94, %p95
      %p97 = scmp.ne.s32.totalorder %s86, %s89
      %p98 = scmp.eq.s32.totalorder %s20, 1
      %p99 = por %p97, %p98
      %p100 = scmp.ne.s32.totalorder %s89, %s90
      %p101 = scmp.eq.s32.totalorder %s20, 0
      %p102 = por %p100, %p101
      %p103 = scmp.ne.s32.totalorder %s89, %s90
      %p104 = scmp.eq.s32.totalorder %s21, 1
      %p105 = por %p103, %p104
      %p107 = scmp.ne.s32.totalorder %s90, %s106
      %p108 = scmp.eq.s32.totalorder %s21, 0
      %p109 = por %p107, %p108
      %p110 = scmp.le.s32.totalorder 1, %s15
      %p111 = scmp.lt.s32.totalorder %s15, 3
      %p112 = pnand %p110, %p111
      %p113 = pneg %p112
      // Predicated region
      $region9: #{tpu_custom_call.1} parent=5 // pred_check
        _
      $region10: #{tpu_custom_call.1} parent=5 // pred_check_branch
        %115 = sbr.rel (%p112) target = $region12
      $region11: #{tpu_custom_call.1} parent=5 // pred_region
        %s116 = ssub.s32 %s15, 1
        // Predicated region
        $region13: #{tpu_custom_call.1} parent=11 // pred_check
          %p117 = pneg %p48
        $region14: #{tpu_custom_call.1} parent=11 // pred_check_branch
          %119 = sbr.rel (%p117) target = $region16
        $region15: #{tpu_custom_call.1} parent=11 // pred_region
          %s121 = ssub.s32 16, 16
          %122 = vsyncadd [#allocation8], %s121
          %125 = dma.hbm_to_smem %s0, 16, [#allocation5], [#allocation8]
        $region16: #{tpu_custom_call.1} parent=11 // pred_fallthru
          _
      $region12: #{tpu_custom_call.1} parent=5 // pred_fallthru
        _
      %p126 = scmp.lt.s32.totalorder %s15, 2
      // Predicated region
      $region17: #{tpu_custom_call.1} parent=5 // pred_check
        %p127 = pneg %p126
      $region18: #{tpu_custom_call.1} parent=5 // pred_check_branch
        %129 = sbr.rel (%p127) target = $region20
      $region19: #{tpu_custom_call.1} parent=5 // pred_region
        // Predicated region
        $region21: #{tpu_custom_call.1} parent=19 // pred_check
          %p130 = pneg %p70
        $region22: #{tpu_custom_call.1} parent=19 // pred_check_branch
          %132 = sbr.rel (%p130) target = $region24
        $region23: #{tpu_custom_call.1} parent=19 // pred_region
          %s133 = sand.u32 %s60, 1
          %s134 = scalar_lea.sflag [#allocation6], %s133
          %s135 = sand.u32 %s60, 1
          %s136 = smul.addr %s135, 64
          %s137 = scalar_lea.vmem [#allocation9], %s136
          %s138 = smul.u32 4, %s23
          %s140 = ssub.s32 1024, 1024
          %141 = vsyncadd %s134, %s140
          %s142 = smul.addr %s138, 2
          %s143 = smul.addr %s22, 8
          %s144 = sadd.s32 %s142, %s143
          %s145 = smul.addr %s144, 128
          %s146 = scalar_lea.hbm %s1, %s145
          %s147 = sshll.u32 %s137, 4
          %s148 = int_to_ptr.vmem [resolvable:$true] %s147
          %153 = dma.hbm_to_vmem [thread:$0]  %s146, 1024, %s148, %s134, 128, 128, 8
        $region24: #{tpu_custom_call.1} parent=19 // pred_fallthru
          _
      $region20: #{tpu_custom_call.1} parent=5 // pred_fallthru
        _
      %p154 = scmp.le.s32.totalorder 1, %s15
      %p155 = scmp.lt.s32.totalorder %s15, 3
      %p156 = pnand %p154, %p155
      %p157 = pneg %p156
      // Predicated region
      $region25: #{tpu_custom_call.1} parent=5 // pred_check
        _
      $region26: #{tpu_custom_call.1} parent=5 // pred_check_branch
        %159 = sbr.rel (%p156) target = $region28
      $region27: #{tpu_custom_call.1} parent=5 // pred_region
        %s160 = ssub.s32 %s15, 1
        // Predicated region
        $region29: #{tpu_custom_call.1} parent=27 // pred_check
          %p161 = pneg %p48
        $region30: #{tpu_custom_call.1} parent=27 // pred_check_branch
          %163 = sbr.rel (%p161) target = $region32
        $region31: #{tpu_custom_call.1} parent=27 // pred_region
          %164 = dma.done [#allocation8], 16
        $region32: #{tpu_custom_call.1} parent=27 // pred_fallthru
          _
        %s165 = sand.u32 %s63, 1
        %s166 = scalar_lea.sflag [#allocation6], %s165
        %s167 = sand.u32 %s63, 1
        %s168 = smul.addr %s167, 64
        %s169 = scalar_lea.vmem [#allocation9], %s168
        // Predicated region
        $region33: #{tpu_custom_call.1} parent=27 // pred_check
          %p170 = pneg %p76
        $region34: #{tpu_custom_call.1} parent=27 // pred_check_branch
          %172 = sbr.rel (%p170) target = $region36
        $region35: #{tpu_custom_call.1} parent=27 // pred_region
          %173 = dma.done %s166, 1024
        $region36: #{tpu_custom_call.1} parent=27 // pred_fallthru
          _
        %174 = sfence
        %p175 = pneg %p48
        %p176 = pneg %p45
        %s177 = sand.u32 %s63, 1
        %s178 = scalar_lea.sflag [#allocation6], %s177
        %s179 = sand.u32 %s63, 1
        %s180 = smul.addr %s179, 64
        %s181 = scalar_lea.vmem [#allocation9], %s180
        %p182 = pneg %p76
        %p183 = pneg %p73
        %p184 = pneg %p102
        %p185 = pneg %p99
        %s186 = sand.u32 %s89, 1
        %s187 = scalar_lea.sflag [#allocation7], %s186
        %s188 = sand.u32 %s89, 1
        %s189 = smul.addr %s188, 16
        %s190 = scalar_lea.vmem [#allocation10], %s189
        %s191 = smul.u32 4, %s25
        %p192 = scmp.eq.s32.totalorder %s25, 0
        // Predicated region
        $region37: #{tpu_custom_call.1} parent=27 // pred_check
          %p193 = pneg %p192
        $region38: #{tpu_custom_call.1} parent=27 // pred_check_branch
          %195 = sbr.rel (%p193) target = $region40
        $region39: #{tpu_custom_call.1} parent=27 // pred_region
          %vm196 = vcmask 130048
          %197 = vst.msk [vmem:[#allocation2] sm:$0xff] %vm196, 0.0
          %198 = vst.msk [vmem:[#allocation2 + $0x8] sm:$0xff] %vm196, 0.0
          %199 = vst.msk [vmem:[#allocation3] sm:$0xff] %vm196, -inf
          %200 = vst.msk [vmem:[#allocation3 + $0x8] sm:$0xff] %vm196, -inf
        $region40: #{tpu_custom_call.1} parent=27 // pred_fallthru
          _
        %v201 = vld [vmem:[#allocation2] sm:$0xff]
        %v202 = vld [vmem:[#allocation2 + $0x8] sm:$0xff]
        %v203 = vld [vmem:[#allocation3] sm:$0xff]
        %v204 = vld [vmem:[#allocation3 + $0x8] sm:$0xff]
        %v205 = vld [vmem:[%s169] sm:$0xff]
        %v206 = vld [vmem:[%s169 + $0x8] sm:$0xff]
        %v207 = vld [vmem:[%s169 + $0x10] sm:$0xff]
        %v208 = vld [vmem:[%s169 + $0x18] sm:$0xff]
        %v209 = vld [vmem:[%s169 + $0x20] sm:$0xff]
        %v210 = vld [vmem:[%s169 + $0x28] sm:$0xff]
        %v211 = vld [vmem:[%s169 + $0x30] sm:$0xff]
        %v212 = vld [vmem:[%s169 + $0x38] sm:$0xff]
        %vm213 = vcmask 130048
        %v214 = vsel %vm213, %v205, 0.0
        %v215 = vsel %vm213, %v207, 0.0
        %v216 = vadd.f32 %v214, %v215
        %v217 = vsel %vm213, %v209, 0.0
        %v218 = vadd.f32 %v216, %v217
        %v219 = vsel %vm213, %v211, 0.0
        %v220 = vadd.f32 %v218, %v219
        %v221 = vsel %vm213, %v206, 0.0
        %v222 = vsel %vm213, %v208, 0.0
        %v223 = vadd.f32 %v221, %v222
        %v224 = vsel %vm213, %v210, 0.0
        %v225 = vadd.f32 %v223, %v224
        %v226 = vsel %vm213, %v212, 0.0
        %v227 = vadd.f32 %v225, %v226
        %v228 = vadd.f32 %v201, %v220
        %v229 = vadd.f32 %v202, %v227
        %v230 = vsel %vm213, %v205, -inf
        %v231 = vsel %vm213, %v207, -inf
        %v232 = vsel %vm213, %v209, -inf
        %v233 = vmax.f32 %v230, %v232
        %v234 = vsel %vm213, %v211, -inf
        %v235 = vmax.f32 %v231, %v234
        %v236 = vmax.f32 %v233, %v235
        %v237 = vsel %vm213, %v206, -inf
        %v238 = vsel %vm213, %v208, -inf
        %v239 = vsel %vm213, %v210, -inf
        %v240 = vmax.f32 %v237, %v239
        %v241 = vsel %vm213, %v212, -inf
        %v242 = vmax.f32 %v238, %v241
        %v243 = vmax.f32 %v240, %v242
        %v244 = vmax.f32 %v203, %v236
        %v245 = vmax.f32 %v204, %v243
        %246 = vst.msk [vmem:[#allocation2] sm:$0xff] %vm213, %v228
        %247 = vst.msk [vmem:[#allocation2 + $0x8] sm:$0xff] %vm213, %v229
        %248 = vst.msk [vmem:[#allocation3] sm:$0xff] %vm213, %v244
        %249 = vst.msk [vmem:[#allocation3 + $0x8] sm:$0xff] %vm213, %v245
        // Predicated region
        $region41: #{tpu_custom_call.1} parent=27 // pred_check
          %p250 = pneg %p192
        $region42: #{tpu_custom_call.1} parent=27 // pred_check_branch
          %252 = sbr.rel (%p250) target = $region44
        $region43: #{tpu_custom_call.1} parent=27 // pred_region
          %v253 = vmul.f32 %v228, 0.25
          %v254 = vmul.f32 %v229, 0.25
          %vm255 = vcmask 179200
          %256 = vst.msk [vmem:[#allocation4] sm:$0xff] %vm255, 0.0
          %257 = vst.msk [vmem:[#allocation4 + $0x8] sm:$0xff] %vm255, 0.0
          %vm258 = vcmask 177152
          %259 = vst.msk [vmem:[#allocation4 + $0x10] sm:$0x3f] %vm258, 0.0
          %260 = vst.msk [vmem:[#allocation4 + $0x18] sm:$0xff] %vm255, 0.0
          %261 = vst.msk [vmem:[#allocation4 + $0x20] sm:$0xff] %vm255, 0.0
          %262 = vst.msk [vmem:[#allocation4 + $0x28] sm:$0x3f] %vm258, 0.0
          %265 = vrot.lane.b32.xlu0 %v253, 3
          %v266 = vpop.permute.xlu0 %265
          %267 = vrot.lane.b32.xlu0 %v254, 3
          %v268 = vpop.permute.xlu0 %267
          %vm271 = vcmask 154648
          %272 = vst.msk [vmem:[#allocation4 + $0x3] sm:$0xff] %vm271, %v266
          %273 = vst.msk [vmem:[#allocation4 + $0xb] sm:$0xff] %vm271, %v268
          %276 = vrot.lane.b32.xlu0 %v244, 3
          %v277 = vpop.permute.xlu0 %276
          %278 = vrot.lane.b32.xlu0 %v245, 3
          %v279 = vpop.permute.xlu0 %278
          %s282 = scalar_lea.vmem [#allocation4], 24
          %283 = vst.msk [vmem:[%s282 + $0x3] sm:$0xff] %vm271, %v277
          %284 = vst.msk [vmem:[%s282 + $0xb] sm:$0xff] %vm271, %v279
          %v285 = vld [vmem:[#allocation4] sm:$0xff]
          %v286 = vld [vmem:[#allocation4 + $0x8] sm:$0xff]
          %s287 = sld [smem:[#allocation5]]
          %v288 = vstv %s287
          %v289 = vmul.f32 %v288, %v285
          %v290 = vmul.f32 %v288, %v286
          %v291 = vadd.f32 %v289, 0.0
          %v292 = vadd.f32 %v290, 0.0
          %s293 = sld [smem:[#allocation5 + $0x1]]
          %v294 = vstv %s293
          %v295 = vmul.f32 %v294, %v285
          %v296 = vmul.f32 %v294, %v286
          %299 = vrot.lane.b32.xlu0 %v295, 127
          %v300 = vpop.permute.xlu0 %299
          %301 = vrot.lane.b32.xlu0 %v296, 127
          %v302 = vpop.permute.xlu0 %301
          %v305 = vadd.f32 %v291, %v300
          %v306 = vadd.f32 %v292, %v302
          %s307 = sld [smem:[#allocation5 + $0x2]]
          %v308 = vstv %s307
          %v309 = vmul.f32 %v308, %v285
          %v310 = vmul.f32 %v308, %v286
          %313 = vrot.lane.b32.xlu0 %v309, 126
          %v314 = vpop.permute.xlu0 %313
          %315 = vrot.lane.b32.xlu0 %v310, 126
          %v316 = vpop.permute.xlu0 %315
          %v319 = vadd.f32 %v305, %v314
          %v320 = vadd.f32 %v306, %v316
          %s321 = sld [smem:[#allocation5 + $0x3]]
          %v322 = vstv %s321
          %v323 = vmul.f32 %v322, %v285
          %v324 = vmul.f32 %v322, %v286
          %327 = vrot.lane.b32.xlu0 %v323, 125
          %v328 = vpop.permute.xlu0 %327
          %329 = vrot.lane.b32.xlu0 %v324, 125
          %v330 = vpop.permute.xlu0 %329
          %v333 = vadd.f32 %v319, %v328
          %v334 = vadd.f32 %v320, %v330
          %s335 = sld [smem:[#allocation5 + $0x4]]
          %v336 = vstv %s335
          %v337 = vmul.f32 %v336, %v285
          %v338 = vmul.f32 %v336, %v286
          %341 = vrot.lane.b32.xlu0 %v337, 124
          %v342 = vpop.permute.xlu0 %341
          %343 = vrot.lane.b32.xlu0 %v338, 124
          %v344 = vpop.permute.xlu0 %343
          %v347 = vadd.f32 %v333, %v342
          %v348 = vadd.f32 %v334, %v344
          %s349 = sld [smem:[#allocation5 + $0x5]]
          %v350 = vstv %s349
          %v351 = vmul.f32 %v350, %v285
          %v352 = vmul.f32 %v350, %v286
          %355 = vrot.lane.b32.xlu0 %v351, 123
          %v356 = vpop.permute.xlu0 %355
          %357 = vrot.lane.b32.xlu0 %v352, 123
          %v358 = vpop.permute.xlu0 %357
          %v361 = vadd.f32 %v347, %v356
          %v362 = vadd.f32 %v348, %v358
          %s363 = sld [smem:[#allocation5 + $0x6]]
          %v364 = vstv %s363
          %v365 = vmul.f32 %v364, %v285
          %v366 = vmul.f32 %v364, %v286
          %369 = vrot.lane.b32.xlu0 %v365, 122
          %v370 = vpop.permute.xlu0 %369
          %371 = vrot.lane.b32.xlu0 %v366, 122
          %v372 = vpop.permute.xlu0 %371
          %v375 = vadd.f32 %v361, %v370
          %v376 = vadd.f32 %v362, %v372
          %v377 = vld [vmem:[#allocation4 + $0x1] sm:$0xff]
          %v378 = vld [vmem:[#allocation4 + $0x9] sm:$0xff]
          %s379 = sld [smem:[#allocation5 + $0x7]]
          %v380 = vstv %s379
          %v381 = vmul.f32 %v380, %v377
          %v382 = vmul.f32 %v380, %v378
          %v383 = vadd.f32 %v375, %v381
          %v384 = vadd.f32 %v376, %v382
          %s385 = sld [smem:[#allocation5 + $0x8]]
          %v386 = vstv %s385
          %v387 = vmul.f32 %v386, %v377
          %v388 = vmul.f32 %v386, %v378
          %391 = vrot.lane.b32.xlu0 %v387, 127
          %v392 = vpop.permute.xlu0 %391
          %393 = vrot.lane.b32.xlu0 %v388, 127
          %v394 = vpop.permute.xlu0 %393
          %v397 = vadd.f32 %v383, %v392
          %v398 = vadd.f32 %v384, %v394
          %s399 = sld [smem:[#allocation5 + $0x9]]
          %v400 = vstv %s399
          %v401 = vmul.f32 %v400, %v377
          %v402 = vmul.f32 %v400, %v378
          %405 = vrot.lane.b32.xlu0 %v401, 126
          %v406 = vpop.permute.xlu0 %405
          %407 = vrot.lane.b32.xlu0 %v402, 126
          %v408 = vpop.permute.xlu0 %407
          %v411 = vadd.f32 %v397, %v406
          %v412 = vadd.f32 %v398, %v408
          %s413 = sld [smem:[#allocation5 + $0xa]]
          %v414 = vstv %s413
          %v415 = vmul.f32 %v414, %v377
          %v416 = vmul.f32 %v414, %v378
          %419 = vrot.lane.b32.xlu0 %v415, 125
          %v420 = vpop.permute.xlu0 %419
          %421 = vrot.lane.b32.xlu0 %v416, 125
          %v422 = vpop.permute.xlu0 %421
          %v425 = vadd.f32 %v411, %v420
          %v426 = vadd.f32 %v412, %v422
          %s427 = sld [smem:[#allocation5 + $0xb]]
          %v428 = vstv %s427
          %v429 = vmul.f32 %v428, %v377
          %v430 = vmul.f32 %v428, %v378
          %433 = vrot.lane.b32.xlu0 %v429, 124
          %v434 = vpop.permute.xlu0 %433
          %435 = vrot.lane.b32.xlu0 %v430, 124
          %v436 = vpop.permute.xlu0 %435
          %v439 = vadd.f32 %v425, %v434
          %v440 = vadd.f32 %v426, %v436
          %s441 = sld [smem:[#allocation5 + $0xc]]
          %v442 = vstv %s441
          %v443 = vmul.f32 %v442, %v377
          %v444 = vmul.f32 %v442, %v378
          %447 = vrot.lane.b32.xlu0 %v443, 123
          %v448 = vpop.permute.xlu0 %447
          %449 = vrot.lane.b32.xlu0 %v444, 123
          %v450 = vpop.permute.xlu0 %449
          %v453 = vadd.f32 %v439, %v448
          %v454 = vadd.f32 %v440, %v450
          %s455 = sld [smem:[#allocation5 + $0xd]]
          %v456 = vstv %s455
          %v457 = vmul.f32 %v456, %v377
          %v458 = vmul.f32 %v456, %v378
          %461 = vrot.lane.b32.xlu0 %v457, 122
          %v462 = vpop.permute.xlu0 %461
          %463 = vrot.lane.b32.xlu0 %v458, 122
          %v464 = vpop.permute.xlu0 %463
          %v467 = vadd.f32 %v453, %v462
          %v468 = vadd.f32 %v454, %v464
          %v469 = vld [vmem:[#allocation4 + $0x2] sm:$0xff]
          %v470 = vld [vmem:[#allocation4 + $0xa] sm:$0xff]
          %s471 = sld [smem:[#allocation5 + $0xe]]
          %v472 = vstv %s471
          %v473 = vmul.f32 %v472, %v469
          %v474 = vmul.f32 %v472, %v470
          %v475 = vadd.f32 %v467, %v473
          %v476 = vadd.f32 %v468, %v474
          %s477 = sld [smem:[#allocation5 + $0xf]]
          %v478 = vstv %s477
          %v479 = vmul.f32 %v478, %v469
          %v480 = vmul.f32 %v478, %v470
          %483 = vrot.lane.b32.xlu0 %v479, 127
          %v484 = vpop.permute.xlu0 %483
          %485 = vrot.lane.b32.xlu0 %v480, 127
          %v486 = vpop.permute.xlu0 %485
          %v489 = vadd.f32 %v475, %v484
          %v490 = vadd.f32 %v476, %v486
          %s491 = sld [smem:[#allocation5 + $0x10]]
          %v492 = vstv %s491
          %v493 = vmul.f32 %v492, %v469
          %v494 = vmul.f32 %v492, %v470
          %497 = vrot.lane.b32.xlu0 %v493, 126
          %v498 = vpop.permute.xlu0 %497
          %499 = vrot.lane.b32.xlu0 %v494, 126
          %v500 = vpop.permute.xlu0 %499
          %v503 = vadd.f32 %v489, %v498
          %v504 = vadd.f32 %v490, %v500
          %s505 = sld [smem:[#allocation5 + $0x11]]
          %v506 = vstv %s505
          %v507 = vmul.f32 %v506, %v469
          %v508 = vmul.f32 %v506, %v470
          %511 = vrot.lane.b32.xlu0 %v507, 125
          %v512 = vpop.permute.xlu0 %511
          %513 = vrot.lane.b32.xlu0 %v508, 125
          %v514 = vpop.permute.xlu0 %513
          %v517 = vadd.f32 %v503, %v512
          %v518 = vadd.f32 %v504, %v514
          %s519 = sld [smem:[#allocation5 + $0x12]]
          %v520 = vstv %s519
          %v521 = vmul.f32 %v520, %v469
          %v522 = vmul.f32 %v520, %v470
          %525 = vrot.lane.b32.xlu0 %v521, 124
          %v526 = vpop.permute.xlu0 %525
          %527 = vrot.lane.b32.xlu0 %v522, 124
          %v528 = vpop.permute.xlu0 %527
          %v531 = vadd.f32 %v517, %v526
          %v532 = vadd.f32 %v518, %v528
          %s533 = sld [smem:[#allocation5 + $0x13]]
          %v534 = vstv %s533
          %v535 = vmul.f32 %v534, %v469
          %v536 = vmul.f32 %v534, %v470
          %539 = vrot.lane.b32.xlu0 %v535, 123
          %v540 = vpop.permute.xlu0 %539
          %541 = vrot.lane.b32.xlu0 %v536, 123
          %v542 = vpop.permute.xlu0 %541
          %v545 = vadd.f32 %v531, %v540
          %v546 = vadd.f32 %v532, %v542
          %s547 = sld [smem:[#allocation5 + $0x14]]
          %v548 = vstv %s547
          %v549 = vmul.f32 %v548, %v469
          %v550 = vmul.f32 %v548, %v470
          %553 = vrot.lane.b32.xlu0 %v549, 122
          %v554 = vpop.permute.xlu0 %553
          %555 = vrot.lane.b32.xlu0 %v550, 122
          %v556 = vpop.permute.xlu0 %555
          %v559 = vadd.f32 %v545, %v554
          %v560 = vadd.f32 %v546, %v556
          %v561 = vld [vmem:[#allocation4 + $0x3] sm:$0xff]
          %v562 = vld [vmem:[#allocation4 + $0xb] sm:$0xff]
          %s563 = sld [smem:[#allocation5 + $0x15]]
          %v564 = vstv %s563
          %v565 = vmul.f32 %v564, %v561
          %v566 = vmul.f32 %v564, %v562
          %v567 = vadd.f32 %v559, %v565
          %v568 = vadd.f32 %v560, %v566
          %s569 = sld [smem:[#allocation5 + $0x16]]
          %v570 = vstv %s569
          %v571 = vmul.f32 %v570, %v561
          %v572 = vmul.f32 %v570, %v562
          %575 = vrot.lane.b32.xlu0 %v571, 127
          %v576 = vpop.permute.xlu0 %575
          %577 = vrot.lane.b32.xlu0 %v572, 127
          %v578 = vpop.permute.xlu0 %577
          %v581 = vadd.f32 %v567, %v576
          %v582 = vadd.f32 %v568, %v578
          %s583 = sld [smem:[#allocation5 + $0x17]]
          %v584 = vstv %s583
          %v585 = vmul.f32 %v584, %v561
          %v586 = vmul.f32 %v584, %v562
          %589 = vrot.lane.b32.xlu0 %v585, 126
          %v590 = vpop.permute.xlu0 %589
          %591 = vrot.lane.b32.xlu0 %v586, 126
          %v592 = vpop.permute.xlu0 %591
          %v595 = vadd.f32 %v581, %v590
          %v596 = vadd.f32 %v582, %v592
          %s597 = sld [smem:[#allocation5 + $0x18]]
          %v598 = vstv %s597
          %v599 = vmul.f32 %v598, %v561
          %v600 = vmul.f32 %v598, %v562
          %603 = vrot.lane.b32.xlu0 %v599, 125
          %v604 = vpop.permute.xlu0 %603
          %605 = vrot.lane.b32.xlu0 %v600, 125
          %v606 = vpop.permute.xlu0 %605
          %v609 = vadd.f32 %v595, %v604
          %v610 = vadd.f32 %v596, %v606
          %s611 = sld [smem:[#allocation5 + $0x19]]
          %v612 = vstv %s611
          %v613 = vmul.f32 %v612, %v561
          %v614 = vmul.f32 %v612, %v562
          %617 = vrot.lane.b32.xlu0 %v613, 124
          %v618 = vpop.permute.xlu0 %617
          %619 = vrot.lane.b32.xlu0 %v614, 124
          %v620 = vpop.permute.xlu0 %619
          %v623 = vadd.f32 %v609, %v618
          %v624 = vadd.f32 %v610, %v620
          %s625 = sld [smem:[#allocation5 + $0x1a]]
          %v626 = vstv %s625
          %v627 = vmul.f32 %v626, %v561
          %v628 = vmul.f32 %v626, %v562
          %631 = vrot.lane.b32.xlu0 %v627, 123
          %v632 = vpop.permute.xlu0 %631
          %633 = vrot.lane.b32.xlu0 %v628, 123
          %v634 = vpop.permute.xlu0 %633
          %v637 = vadd.f32 %v623, %v632
          %v638 = vadd.f32 %v624, %v634
          %s639 = sld [smem:[#allocation5 + $0x1b]]
          %v640 = vstv %s639
          %v641 = vmul.f32 %v640, %v561
          %v642 = vmul.f32 %v640, %v562
          %645 = vrot.lane.b32.xlu0 %v641, 122
          %v646 = vpop.permute.xlu0 %645
          %647 = vrot.lane.b32.xlu0 %v642, 122
          %v648 = vpop.permute.xlu0 %647
          %v651 = vadd.f32 %v637, %v646
          %v652 = vadd.f32 %v638, %v648
          %v653 = vld [vmem:[#allocation4 + $0x4] sm:$0xff]
          %v654 = vld [vmem:[#allocation4 + $0xc] sm:$0xff]
          %s655 = sld [smem:[#allocation5 + $0x1c]]
          %v656 = vstv %s655
          %v657 = vmul.f32 %v656, %v653
          %v658 = vmul.f32 %v656, %v654
          %v659 = vadd.f32 %v651, %v657
          %v660 = vadd.f32 %v652, %v658
          %s661 = sld [smem:[#allocation5 + $0x1d]]
          %v662 = vstv %s661
          %v663 = vmul.f32 %v662, %v653
          %v664 = vmul.f32 %v662, %v654
          %667 = vrot.lane.b32.xlu0 %v663, 127
          %v668 = vpop.permute.xlu0 %667
          %669 = vrot.lane.b32.xlu0 %v664, 127
          %v670 = vpop.permute.xlu0 %669
          %v673 = vadd.f32 %v659, %v668
          %v674 = vadd.f32 %v660, %v670
          %s675 = sld [smem:[#allocation5 + $0x1e]]
          %v676 = vstv %s675
          %v677 = vmul.f32 %v676, %v653
          %v678 = vmul.f32 %v676, %v654
          %681 = vrot.lane.b32.xlu0 %v677, 126
          %v682 = vpop.permute.xlu0 %681
          %683 = vrot.lane.b32.xlu0 %v678, 126
          %v684 = vpop.permute.xlu0 %683
          %v687 = vadd.f32 %v673, %v682
          %v688 = vadd.f32 %v674, %v684
          %s689 = sld [smem:[#allocation5 + $0x1f]]
          %v690 = vstv %s689
          %v691 = vmul.f32 %v690, %v653
          %v692 = vmul.f32 %v690, %v654
          %695 = vrot.lane.b32.xlu0 %v691, 125
          %v696 = vpop.permute.xlu0 %695
          %697 = vrot.lane.b32.xlu0 %v692, 125
          %v698 = vpop.permute.xlu0 %697
          %v701 = vadd.f32 %v687, %v696
          %v702 = vadd.f32 %v688, %v698
          %s703 = sld [smem:[#allocation5 + $0x20]]
          %v704 = vstv %s703
          %v705 = vmul.f32 %v704, %v653
          %v706 = vmul.f32 %v704, %v654
          %709 = vrot.lane.b32.xlu0 %v705, 124
          %v710 = vpop.permute.xlu0 %709
          %711 = vrot.lane.b32.xlu0 %v706, 124
          %v712 = vpop.permute.xlu0 %711
          %v715 = vadd.f32 %v701, %v710
          %v716 = vadd.f32 %v702, %v712
          %s717 = sld [smem:[#allocation5 + $0x21]]
          %v718 = vstv %s717
          %v719 = vmul.f32 %v718, %v653
          %v720 = vmul.f32 %v718, %v654
          %723 = vrot.lane.b32.xlu0 %v719, 123
          %v724 = vpop.permute.xlu0 %723
          %725 = vrot.lane.b32.xlu0 %v720, 123
          %v726 = vpop.permute.xlu0 %725
          %v729 = vadd.f32 %v715, %v724
          %v730 = vadd.f32 %v716, %v726
          %s731 = sld [smem:[#allocation5 + $0x22]]
          %v732 = vstv %s731
          %v733 = vmul.f32 %v732, %v653
          %v734 = vmul.f32 %v732, %v654
          %737 = vrot.lane.b32.xlu0 %v733, 122
          %v738 = vpop.permute.xlu0 %737
          %739 = vrot.lane.b32.xlu0 %v734, 122
          %v740 = vpop.permute.xlu0 %739
          %v743 = vadd.f32 %v729, %v738
          %v744 = vadd.f32 %v730, %v740
          %v745 = vld [vmem:[#allocation4 + $0x5] sm:$0xff]
          %v746 = vld [vmem:[#allocation4 + $0xd] sm:$0xff]
          %s747 = sld [smem:[#allocation5 + $0x23]]
          %v748 = vstv %s747
          %v749 = vmul.f32 %v748, %v745
          %v750 = vmul.f32 %v748, %v746
          %v751 = vadd.f32 %v743, %v749
          %v752 = vadd.f32 %v744, %v750
          %s753 = sld [smem:[#allocation5 + $0x24]]
          %v754 = vstv %s753
          %v755 = vmul.f32 %v754, %v745
          %v756 = vmul.f32 %v754, %v746
          %759 = vrot.lane.b32.xlu0 %v755, 127
          %v760 = vpop.permute.xlu0 %759
          %761 = vrot.lane.b32.xlu0 %v756, 127
          %v762 = vpop.permute.xlu0 %761
          %v765 = vadd.f32 %v751, %v760
          %v766 = vadd.f32 %v752, %v762
          %s767 = sld [smem:[#allocation5 + $0x25]]
          %v768 = vstv %s767
          %v769 = vmul.f32 %v768, %v745
          %v770 = vmul.f32 %v768, %v746
          %773 = vrot.lane.b32.xlu0 %v769, 126
          %v774 = vpop.permute.xlu0 %773
          %775 = vrot.lane.b32.xlu0 %v770, 126
          %v776 = vpop.permute.xlu0 %775
          %v779 = vadd.f32 %v765, %v774
          %v780 = vadd.f32 %v766, %v776
          %s781 = sld [smem:[#allocation5 + $0x26]]
          %v782 = vstv %s781
          %v783 = vmul.f32 %v782, %v745
          %v784 = vmul.f32 %v782, %v746
          %787 = vrot.lane.b32.xlu0 %v783, 125
          %v788 = vpop.permute.xlu0 %787
          %789 = vrot.lane.b32.xlu0 %v784, 125
          %v790 = vpop.permute.xlu0 %789
          %v793 = vadd.f32 %v779, %v788
          %v794 = vadd.f32 %v780, %v790
          %s795 = sld [smem:[#allocation5 + $0x27]]
          %v796 = vstv %s795
          %v797 = vmul.f32 %v796, %v745
          %v798 = vmul.f32 %v796, %v746
          %801 = vrot.lane.b32.xlu0 %v797, 124
          %v802 = vpop.permute.xlu0 %801
          %803 = vrot.lane.b32.xlu0 %v798, 124
          %v804 = vpop.permute.xlu0 %803
          %v807 = vadd.f32 %v793, %v802
          %v808 = vadd.f32 %v794, %v804
          %s809 = sld [smem:[#allocation5 + $0x28]]
          %v810 = vstv %s809
          %v811 = vmul.f32 %v810, %v745
          %v812 = vmul.f32 %v810, %v746
          %815 = vrot.lane.b32.xlu0 %v811, 123
          %v816 = vpop.permute.xlu0 %815
          %817 = vrot.lane.b32.xlu0 %v812, 123
          %v818 = vpop.permute.xlu0 %817
          %v821 = vadd.f32 %v807, %v816
          %v822 = vadd.f32 %v808, %v818
          %s823 = sld [smem:[#allocation5 + $0x29]]
          %v824 = vstv %s823
          %v825 = vmul.f32 %v824, %v745
          %v826 = vmul.f32 %v824, %v746
          %829 = vrot.lane.b32.xlu0 %v825, 122
          %v830 = vpop.permute.xlu0 %829
          %831 = vrot.lane.b32.xlu0 %v826, 122
          %v832 = vpop.permute.xlu0 %831
          %v835 = vadd.f32 %v821, %v830
          %v836 = vadd.f32 %v822, %v832
          %v837 = vld [vmem:[#allocation4 + $0x6] sm:$0xff]
          %v838 = vld [vmem:[#allocation4 + $0xe] sm:$0xff]
          %s839 = sld [smem:[#allocation5 + $0x2a]]
          %v840 = vstv %s839
          %v841 = vmul.f32 %v840, %v837
          %v842 = vmul.f32 %v840, %v838
          %v843 = vadd.f32 %v835, %v841
          %v844 = vadd.f32 %v836, %v842
          %s845 = sld [smem:[#allocation5 + $0x2b]]
          %v846 = vstv %s845
          %v847 = vmul.f32 %v846, %v837
          %v848 = vmul.f32 %v846, %v838
          %851 = vrot.lane.b32.xlu0 %v847, 127
          %v852 = vpop.permute.xlu0 %851
          %853 = vrot.lane.b32.xlu0 %v848, 127
          %v854 = vpop.permute.xlu0 %853
          %v857 = vadd.f32 %v843, %v852
          %v858 = vadd.f32 %v844, %v854
          %s859 = sld [smem:[#allocation5 + $0x2c]]
          %v860 = vstv %s859
          %v861 = vmul.f32 %v860, %v837
          %v862 = vmul.f32 %v860, %v838
          %865 = vrot.lane.b32.xlu0 %v861, 126
          %v866 = vpop.permute.xlu0 %865
          %867 = vrot.lane.b32.xlu0 %v862, 126
          %v868 = vpop.permute.xlu0 %867
          %v871 = vadd.f32 %v857, %v866
          %v872 = vadd.f32 %v858, %v868
          %s873 = sld [smem:[#allocation5 + $0x2d]]
          %v874 = vstv %s873
          %v875 = vmul.f32 %v874, %v837
          %v876 = vmul.f32 %v874, %v838
          %879 = vrot.lane.b32.xlu0 %v875, 125
          %v880 = vpop.permute.xlu0 %879
          %881 = vrot.lane.b32.xlu0 %v876, 125
          %v882 = vpop.permute.xlu0 %881
          %v885 = vadd.f32 %v871, %v880
          %v886 = vadd.f32 %v872, %v882
          %s887 = sld [smem:[#allocation5 + $0x2e]]
          %v888 = vstv %s887
          %v889 = vmul.f32 %v888, %v837
          %v890 = vmul.f32 %v888, %v838
          %893 = vrot.lane.b32.xlu0 %v889, 124
          %v894 = vpop.permute.xlu0 %893
          %895 = vrot.lane.b32.xlu0 %v890, 124
          %v896 = vpop.permute.xlu0 %895
          %v899 = vadd.f32 %v885, %v894
          %v900 = vadd.f32 %v886, %v896
          %s901 = sld [smem:[#allocation5 + $0x2f]]
          %v902 = vstv %s901
          %v903 = vmul.f32 %v902, %v837
          %v904 = vmul.f32 %v902, %v838
          %907 = vrot.lane.b32.xlu0 %v903, 123
          %v908 = vpop.permute.xlu0 %907
          %909 = vrot.lane.b32.xlu0 %v904, 123
          %v910 = vpop.permute.xlu0 %909
          %v913 = vadd.f32 %v899, %v908
          %v914 = vadd.f32 %v900, %v910
          %s915 = sld [smem:[#allocation5 + $0x30]]
          %v916 = vstv %s915
          %v917 = vmul.f32 %v916, %v837
          %v918 = vmul.f32 %v916, %v838
          %921 = vrot.lane.b32.xlu0 %v917, 122
          %v922 = vpop.permute.xlu0 %921
          %923 = vrot.lane.b32.xlu0 %v918, 122
          %v924 = vpop.permute.xlu0 %923
          %v927 = vadd.f32 %v913, %v922
          %v928 = vadd.f32 %v914, %v924
          %v929 = vld [vmem:[%s282] sm:$0xff]
          %v930 = vld [vmem:[%s282 + $0x8] sm:$0xff]
          %s931 = sld [smem:[#allocation5 + $0x31]]
          %v932 = vstv %s931
          %v933 = vmul.f32 %v932, %v929
          %v934 = vmul.f32 %v932, %v930
          %v935 = vadd.f32 %v927, %v933
          %v936 = vadd.f32 %v928, %v934
          %s937 = sld [smem:[#allocation5 + $0x32]]
          %v938 = vstv %s937
          %v939 = vmul.f32 %v938, %v929
          %v940 = vmul.f32 %v938, %v930
          %943 = vrot.lane.b32.xlu0 %v939, 127
          %v944 = vpop.permute.xlu0 %943
          %945 = vrot.lane.b32.xlu0 %v940, 127
          %v946 = vpop.permute.xlu0 %945
          %v949 = vadd.f32 %v935, %v944
          %v950 = vadd.f32 %v936, %v946
          %s951 = sld [smem:[#allocation5 + $0x33]]
          %v952 = vstv %s951
          %v953 = vmul.f32 %v952, %v929
          %v954 = vmul.f32 %v952, %v930
          %957 = vrot.lane.b32.xlu0 %v953, 126
          %v958 = vpop.permute.xlu0 %957
          %959 = vrot.lane.b32.xlu0 %v954, 126
          %v960 = vpop.permute.xlu0 %959
          %v963 = vadd.f32 %v949, %v958
          %v964 = vadd.f32 %v950, %v960
          %s965 = sld [smem:[#allocation5 + $0x34]]
          %v966 = vstv %s965
          %v967 = vmul.f32 %v966, %v929
          %v968 = vmul.f32 %v966, %v930
          %971 = vrot.lane.b32.xlu0 %v967, 125
          %v972 = vpop.permute.xlu0 %971
          %973 = vrot.lane.b32.xlu0 %v968, 125
          %v974 = vpop.permute.xlu0 %973
          %v977 = vadd.f32 %v963, %v972
          %v978 = vadd.f32 %v964, %v974
          %s979 = sld [smem:[#allocation5 + $0x35]]
          %v980 = vstv %s979
          %v981 = vmul.f32 %v980, %v929
          %v982 = vmul.f32 %v980, %v930
          %985 = vrot.lane.b32.xlu0 %v981, 124
          %v986 = vpop.permute.xlu0 %985
          %987 = vrot.lane.b32.xlu0 %v982, 124
          %v988 = vpop.permute.xlu0 %987
          %v991 = vadd.f32 %v977, %v986
          %v992 = vadd.f32 %v978, %v988
          %s993 = sld [smem:[#allocation5 + $0x36]]
          %v994 = vstv %s993
          %v995 = vmul.f32 %v994, %v929
          %v996 = vmul.f32 %v994, %v930
          %999 = vrot.lane.b32.xlu0 %v995, 123
          %v1000 = vpop.permute.xlu0 %999
          %1001 = vrot.lane.b32.xlu0 %v996, 123
          %v1002 = vpop.permute.xlu0 %1001
          %v1005 = vadd.f32 %v991, %v1000
          %v1006 = vadd.f32 %v992, %v1002
          %s1007 = sld [smem:[#allocation5 + $0x37]]
          %v1008 = vstv %s1007
          %v1009 = vmul.f32 %v1008, %v929
          %v1010 = vmul.f32 %v1008, %v930
          %1013 = vrot.lane.b32.xlu0 %v1009, 122
          %v1014 = vpop.permute.xlu0 %1013
          %1015 = vrot.lane.b32.xlu0 %v1010, 122
          %v1016 = vpop.permute.xlu0 %1015
          %v1019 = vadd.f32 %v1005, %v1014
          %v1020 = vadd.f32 %v1006, %v1016
          %v1021 = vld [vmem:[%s282 + $0x1] sm:$0xff]
          %v1022 = vld [vmem:[%s282 + $0x9] sm:$0xff]
          %s1023 = sld [smem:[#allocation5 + $0x38]]
          %v1024 = vstv %s1023
          %v1025 = vmul.f32 %v1024, %v1021
          %v1026 = vmul.f32 %v1024, %v1022
          %v1027 = vadd.f32 %v1019, %v1025
          %v1028 = vadd.f32 %v1020, %v1026
          %s1029 = sld [smem:[#allocation5 + $0x39]]
          %v1030 = vstv %s1029
          %v1031 = vmul.f32 %v1030, %v1021
          %v1032 = vmul.f32 %v1030, %v1022
          %1035 = vrot.lane.b32.xlu0 %v1031, 127
          %v1036 = vpop.permute.xlu0 %1035
          %1037 = vrot.lane.b32.xlu0 %v1032, 127
          %v1038 = vpop.permute.xlu0 %1037
          %v1041 = vadd.f32 %v1027, %v1036
          %v1042 = vadd.f32 %v1028, %v1038
          %s1043 = sld [smem:[#allocation5 + $0x3a]]
          %v1044 = vstv %s1043
          %v1045 = vmul.f32 %v1044, %v1021
          %v1046 = vmul.f32 %v1044, %v1022
          %1049 = vrot.lane.b32.xlu0 %v1045, 126
          %v1050 = vpop.permute.xlu0 %1049
          %1051 = vrot.lane.b32.xlu0 %v1046, 126
          %v1052 = vpop.permute.xlu0 %1051
          %v1055 = vadd.f32 %v1041, %v1050
          %v1056 = vadd.f32 %v1042, %v1052
          %s1057 = sld [smem:[#allocation5 + $0x3b]]
          %v1058 = vstv %s1057
          %v1059 = vmul.f32 %v1058, %v1021
          %v1060 = vmul.f32 %v1058, %v1022
          %1063 = vrot.lane.b32.xlu0 %v1059, 125
          %v1064 = vpop.permute.xlu0 %1063
          %1065 = vrot.lane.b32.xlu0 %v1060, 125
          %v1066 = vpop.permute.xlu0 %1065
          %v1069 = vadd.f32 %v1055, %v1064
          %v1070 = vadd.f32 %v1056, %v1066
          %s1071 = sld [smem:[#allocation5 + $0x3c]]
          %v1072 = vstv %s1071
          %v1073 = vmul.f32 %v1072, %v1021
          %v1074 = vmul.f32 %v1072, %v1022
          %1077 = vrot.lane.b32.xlu0 %v1073, 124
          %v1078 = vpop.permute.xlu0 %1077
          %1079 = vrot.lane.b32.xlu0 %v1074, 124
          %v1080 = vpop.permute.xlu0 %1079
          %v1083 = vadd.f32 %v1069, %v1078
          %v1084 = vadd.f32 %v1070, %v1080
          %s1085 = sld [smem:[#allocation5 + $0x3d]]
          %v1086 = vstv %s1085
          %v1087 = vmul.f32 %v1086, %v1021
          %v1088 = vmul.f32 %v1086, %v1022
          %1091 = vrot.lane.b32.xlu0 %v1087, 123
          %v1092 = vpop.permute.xlu0 %1091
          %1093 = vrot.lane.b32.xlu0 %v1088, 123
          %v1094 = vpop.permute.xlu0 %1093
          %v1097 = vadd.f32 %v1083, %v1092
          %v1098 = vadd.f32 %v1084, %v1094
          %s1099 = sld [smem:[#allocation5 + $0x3e]]
          %v1100 = vstv %s1099
          %v1101 = vmul.f32 %v1100, %v1021
          %v1102 = vmul.f32 %v1100, %v1022
          %1105 = vrot.lane.b32.xlu0 %v1101, 122
          %v1106 = vpop.permute.xlu0 %1105
          %1107 = vrot.lane.b32.xlu0 %v1102, 122
          %v1108 = vpop.permute.xlu0 %1107
          %v1111 = vadd.f32 %v1097, %v1106
          %v1112 = vadd.f32 %v1098, %v1108
          %v1113 = vld [vmem:[%s282 + $0x2] sm:$0xff]
          %v1114 = vld [vmem:[%s282 + $0xa] sm:$0xff]
          %s1115 = sld [smem:[#allocation5 + $0x3f]]
          %v1116 = vstv %s1115
          %v1117 = vmul.f32 %v1116, %v1113
          %v1118 = vmul.f32 %v1116, %v1114
          %v1119 = vadd.f32 %v1111, %v1117
          %v1120 = vadd.f32 %v1112, %v1118
          %s1121 = sld [smem:[#allocation5 + $0x40]]
          %v1122 = vstv %s1121
          %v1123 = vmul.f32 %v1122, %v1113
          %v1124 = vmul.f32 %v1122, %v1114
          %1127 = vrot.lane.b32.xlu0 %v1123, 127
          %v1128 = vpop.permute.xlu0 %1127
          %1129 = vrot.lane.b32.xlu0 %v1124, 127
          %v1130 = vpop.permute.xlu0 %1129
          %v1133 = vadd.f32 %v1119, %v1128
          %v1134 = vadd.f32 %v1120, %v1130
          %s1135 = sld [smem:[#allocation5 + $0x41]]
          %v1136 = vstv %s1135
          %v1137 = vmul.f32 %v1136, %v1113
          %v1138 = vmul.f32 %v1136, %v1114
          %1141 = vrot.lane.b32.xlu0 %v1137, 126
          %v1142 = vpop.permute.xlu0 %1141
          %1143 = vrot.lane.b32.xlu0 %v1138, 126
          %v1144 = vpop.permute.xlu0 %1143
          %v1147 = vadd.f32 %v1133, %v1142
          %v1148 = vadd.f32 %v1134, %v1144
          %s1149 = sld [smem:[#allocation5 + $0x42]]
          %v1150 = vstv %s1149
          %v1151 = vmul.f32 %v1150, %v1113
          %v1152 = vmul.f32 %v1150, %v1114
          %1155 = vrot.lane.b32.xlu0 %v1151, 125
          %v1156 = vpop.permute.xlu0 %1155
          %1157 = vrot.lane.b32.xlu0 %v1152, 125
          %v1158 = vpop.permute.xlu0 %1157
          %v1161 = vadd.f32 %v1147, %v1156
          %v1162 = vadd.f32 %v1148, %v1158
          %s1163 = sld [smem:[#allocation5 + $0x43]]
          %v1164 = vstv %s1163
          %v1165 = vmul.f32 %v1164, %v1113
          %v1166 = vmul.f32 %v1164, %v1114
          %1169 = vrot.lane.b32.xlu0 %v1165, 124
          %v1170 = vpop.permute.xlu0 %1169
          %1171 = vrot.lane.b32.xlu0 %v1166, 124
          %v1172 = vpop.permute.xlu0 %1171
          %v1175 = vadd.f32 %v1161, %v1170
          %v1176 = vadd.f32 %v1162, %v1172
          %s1177 = sld [smem:[#allocation5 + $0x44]]
          %v1178 = vstv %s1177
          %v1179 = vmul.f32 %v1178, %v1113
          %v1180 = vmul.f32 %v1178, %v1114
          %1183 = vrot.lane.b32.xlu0 %v1179, 123
          %v1184 = vpop.permute.xlu0 %1183
          %1185 = vrot.lane.b32.xlu0 %v1180, 123
          %v1186 = vpop.permute.xlu0 %1185
          %v1189 = vadd.f32 %v1175, %v1184
          %v1190 = vadd.f32 %v1176, %v1186
          %s1191 = sld [smem:[#allocation5 + $0x45]]
          %v1192 = vstv %s1191
          %v1193 = vmul.f32 %v1192, %v1113
          %v1194 = vmul.f32 %v1192, %v1114
          %1197 = vrot.lane.b32.xlu0 %v1193, 122
          %v1198 = vpop.permute.xlu0 %1197
          %1199 = vrot.lane.b32.xlu0 %v1194, 122
          %v1200 = vpop.permute.xlu0 %1199
          %v1203 = vadd.f32 %v1189, %v1198
          %v1204 = vadd.f32 %v1190, %v1200
          %v1205 = vld [vmem:[%s282 + $0x3] sm:$0xff]
          %v1206 = vld [vmem:[%s282 + $0xb] sm:$0xff]
          %s1207 = sld [smem:[#allocation5 + $0x46]]
          %v1208 = vstv %s1207
          %v1209 = vmul.f32 %v1208, %v1205
          %v1210 = vmul.f32 %v1208, %v1206
          %v1211 = vadd.f32 %v1203, %v1209
          %v1212 = vadd.f32 %v1204, %v1210
          %s1213 = sld [smem:[#allocation5 + $0x47]]
          %v1214 = vstv %s1213
          %v1215 = vmul.f32 %v1214, %v1205
          %v1216 = vmul.f32 %v1214, %v1206
          %1219 = vrot.lane.b32.xlu0 %v1215, 127
          %v1220 = vpop.permute.xlu0 %1219
          %1221 = vrot.lane.b32.xlu0 %v1216, 127
          %v1222 = vpop.permute.xlu0 %1221
          %v1225 = vadd.f32 %v1211, %v1220
          %v1226 = vadd.f32 %v1212, %v1222
          %s1227 = sld [smem:[#allocation5 + $0x48]]
          %v1228 = vstv %s1227
          %v1229 = vmul.f32 %v1228, %v1205
          %v1230 = vmul.f32 %v1228, %v1206
          %1233 = vrot.lane.b32.xlu0 %v1229, 126
          %v1234 = vpop.permute.xlu0 %1233
          %1235 = vrot.lane.b32.xlu0 %v1230, 126
          %v1236 = vpop.permute.xlu0 %1235
          %v1239 = vadd.f32 %v1225, %v1234
          %v1240 = vadd.f32 %v1226, %v1236
          %s1241 = sld [smem:[#allocation5 + $0x49]]
          %v1242 = vstv %s1241
          %v1243 = vmul.f32 %v1242, %v1205
          %v1244 = vmul.f32 %v1242, %v1206
          %1247 = vrot.lane.b32.xlu0 %v1243, 125
          %v1248 = vpop.permute.xlu0 %1247
          %1249 = vrot.lane.b32.xlu0 %v1244, 125
          %v1250 = vpop.permute.xlu0 %1249
          %v1253 = vadd.f32 %v1239, %v1248
          %v1254 = vadd.f32 %v1240, %v1250
          %s1255 = sld [smem:[#allocation5 + $0x4a]]
          %v1256 = vstv %s1255
          %v1257 = vmul.f32 %v1256, %v1205
          %v1258 = vmul.f32 %v1256, %v1206
          %1261 = vrot.lane.b32.xlu0 %v1257, 124
          %v1262 = vpop.permute.xlu0 %1261
          %1263 = vrot.lane.b32.xlu0 %v1258, 124
          %v1264 = vpop.permute.xlu0 %1263
          %v1267 = vadd.f32 %v1253, %v1262
          %v1268 = vadd.f32 %v1254, %v1264
          %s1269 = sld [smem:[#allocation5 + $0x4b]]
          %v1270 = vstv %s1269
          %v1271 = vmul.f32 %v1270, %v1205
          %v1272 = vmul.f32 %v1270, %v1206
          %1275 = vrot.lane.b32.xlu0 %v1271, 123
          %v1276 = vpop.permute.xlu0 %1275
          %1277 = vrot.lane.b32.xlu0 %v1272, 123
          %v1278 = vpop.permute.xlu0 %1277
          %v1281 = vadd.f32 %v1267, %v1276
          %v1282 = vadd.f32 %v1268, %v1278
          %s1283 = sld [smem:[#allocation5 + $0x4c]]
          %v1284 = vstv %s1283
          %v1285 = vmul.f32 %v1284, %v1205
          %v1286 = vmul.f32 %v1284, %v1206
          %1289 = vrot.lane.b32.xlu0 %v1285, 122
          %v1290 = vpop.permute.xlu0 %1289
          %1291 = vrot.lane.b32.xlu0 %v1286, 122
          %v1292 = vpop.permute.xlu0 %1291
          %v1295 = vadd.f32 %v1281, %v1290
          %v1296 = vadd.f32 %v1282, %v1292
          %v1297 = vld [vmem:[%s282 + $0x4] sm:$0xff]
          %v1298 = vld [vmem:[%s282 + $0xc] sm:$0xff]
          %s1299 = sld [smem:[#allocation5 + $0x4d]]
          %v1300 = vstv %s1299
          %v1301 = vmul.f32 %v1300, %v1297
          %v1302 = vmul.f32 %v1300, %v1298
          %v1303 = vadd.f32 %v1295, %v1301
          %v1304 = vadd.f32 %v1296, %v1302
          %s1305 = sld [smem:[#allocation5 + $0x4e]]
          %v1306 = vstv %s1305
          %v1307 = vmul.f32 %v1306, %v1297
          %v1308 = vmul.f32 %v1306, %v1298
          %1311 = vrot.lane.b32.xlu0 %v1307, 127
          %v1312 = vpop.permute.xlu0 %1311
          %1313 = vrot.lane.b32.xlu0 %v1308, 127
          %v1314 = vpop.permute.xlu0 %1313
          %v1317 = vadd.f32 %v1303, %v1312
          %v1318 = vadd.f32 %v1304, %v1314
          %s1319 = sld [smem:[#allocation5 + $0x4f]]
          %v1320 = vstv %s1319
          %v1321 = vmul.f32 %v1320, %v1297
          %v1322 = vmul.f32 %v1320, %v1298
          %1325 = vrot.lane.b32.xlu0 %v1321, 126
          %v1326 = vpop.permute.xlu0 %1325
          %1327 = vrot.lane.b32.xlu0 %v1322, 126
          %v1328 = vpop.permute.xlu0 %1327
          %v1331 = vadd.f32 %v1317, %v1326
          %v1332 = vadd.f32 %v1318, %v1328
          %s1333 = sld [smem:[#allocation5 + $0x50]]
          %v1334 = vstv %s1333
          %v1335 = vmul.f32 %v1334, %v1297
          %v1336 = vmul.f32 %v1334, %v1298
          %1339 = vrot.lane.b32.xlu0 %v1335, 125
          %v1340 = vpop.permute.xlu0 %1339
          %1341 = vrot.lane.b32.xlu0 %v1336, 125
          %v1342 = vpop.permute.xlu0 %1341
          %v1345 = vadd.f32 %v1331, %v1340
          %v1346 = vadd.f32 %v1332, %v1342
          %s1347 = sld [smem:[#allocation5 + $0x51]]
          %v1348 = vstv %s1347
          %v1349 = vmul.f32 %v1348, %v1297
          %v1350 = vmul.f32 %v1348, %v1298
          %1353 = vrot.lane.b32.xlu0 %v1349, 124
          %v1354 = vpop.permute.xlu0 %1353
          %1355 = vrot.lane.b32.xlu0 %v1350, 124
          %v1356 = vpop.permute.xlu0 %1355
          %v1359 = vadd.f32 %v1345, %v1354
          %v1360 = vadd.f32 %v1346, %v1356
          %s1361 = sld [smem:[#allocation5 + $0x52]]
          %v1362 = vstv %s1361
          %v1363 = vmul.f32 %v1362, %v1297
          %v1364 = vmul.f32 %v1362, %v1298
          %1367 = vrot.lane.b32.xlu0 %v1363, 123
          %v1368 = vpop.permute.xlu0 %1367
          %1369 = vrot.lane.b32.xlu0 %v1364, 123
          %v1370 = vpop.permute.xlu0 %1369
          %v1373 = vadd.f32 %v1359, %v1368
          %v1374 = vadd.f32 %v1360, %v1370
          %s1375 = sld [smem:[#allocation5 + $0x53]]
          %v1376 = vstv %s1375
          %v1377 = vmul.f32 %v1376, %v1297
          %v1378 = vmul.f32 %v1376, %v1298
          %1381 = vrot.lane.b32.xlu0 %v1377, 122
          %v1382 = vpop.permute.xlu0 %1381
          %1383 = vrot.lane.b32.xlu0 %v1378, 122
          %v1384 = vpop.permute.xlu0 %1383
          %v1387 = vadd.f32 %v1373, %v1382
          %v1388 = vadd.f32 %v1374, %v1384
          %v1389 = vld [vmem:[%s282 + $0x5] sm:$0xff]
          %v1390 = vld [vmem:[%s282 + $0xd] sm:$0xff]
          %s1391 = sld [smem:[#allocation5 + $0x54]]
          %v1392 = vstv %s1391
          %v1393 = vmul.f32 %v1392, %v1389
          %v1394 = vmul.f32 %v1392, %v1390
          %v1395 = vadd.f32 %v1387, %v1393
          %v1396 = vadd.f32 %v1388, %v1394
          %s1397 = sld [smem:[#allocation5 + $0x55]]
          %v1398 = vstv %s1397
          %v1399 = vmul.f32 %v1398, %v1389
          %v1400 = vmul.f32 %v1398, %v1390
          %1403 = vrot.lane.b32.xlu0 %v1399, 127
          %v1404 = vpop.permute.xlu0 %1403
          %1405 = vrot.lane.b32.xlu0 %v1400, 127
          %v1406 = vpop.permute.xlu0 %1405
          %v1409 = vadd.f32 %v1395, %v1404
          %v1410 = vadd.f32 %v1396, %v1406
          %s1411 = sld [smem:[#allocation5 + $0x56]]
          %v1412 = vstv %s1411
          %v1413 = vmul.f32 %v1412, %v1389
          %v1414 = vmul.f32 %v1412, %v1390
          %1417 = vrot.lane.b32.xlu0 %v1413, 126
          %v1418 = vpop.permute.xlu0 %1417
          %1419 = vrot.lane.b32.xlu0 %v1414, 126
          %v1420 = vpop.permute.xlu0 %1419
          %v1423 = vadd.f32 %v1409, %v1418
          %v1424 = vadd.f32 %v1410, %v1420
          %s1425 = sld [smem:[#allocation5 + $0x57]]
          %v1426 = vstv %s1425
          %v1427 = vmul.f32 %v1426, %v1389
          %v1428 = vmul.f32 %v1426, %v1390
          %1431 = vrot.lane.b32.xlu0 %v1427, 125
          %v1432 = vpop.permute.xlu0 %1431
          %1433 = vrot.lane.b32.xlu0 %v1428, 125
          %v1434 = vpop.permute.xlu0 %1433
          %v1437 = vadd.f32 %v1423, %v1432
          %v1438 = vadd.f32 %v1424, %v1434
          %s1439 = sld [smem:[#allocation5 + $0x58]]
          %v1440 = vstv %s1439
          %v1441 = vmul.f32 %v1440, %v1389
          %v1442 = vmul.f32 %v1440, %v1390
          %1445 = vrot.lane.b32.xlu0 %v1441, 124
          %v1446 = vpop.permute.xlu0 %1445
          %1447 = vrot.lane.b32.xlu0 %v1442, 124
          %v1448 = vpop.permute.xlu0 %1447
          %v1451 = vadd.f32 %v1437, %v1446
          %v1452 = vadd.f32 %v1438, %v1448
          %s1453 = sld [smem:[#allocation5 + $0x59]]
          %v1454 = vstv %s1453
          %v1455 = vmul.f32 %v1454, %v1389
          %v1456 = vmul.f32 %v1454, %v1390
          %1459 = vrot.lane.b32.xlu0 %v1455, 123
          %v1460 = vpop.permute.xlu0 %1459
          %1461 = vrot.lane.b32.xlu0 %v1456, 123
          %v1462 = vpop.permute.xlu0 %1461
          %v1465 = vadd.f32 %v1451, %v1460
          %v1466 = vadd.f32 %v1452, %v1462
          %s1467 = sld [smem:[#allocation5 + $0x5a]]
          %v1468 = vstv %s1467
          %v1469 = vmul.f32 %v1468, %v1389
          %v1470 = vmul.f32 %v1468, %v1390
          %1473 = vrot.lane.b32.xlu0 %v1469, 122
          %v1474 = vpop.permute.xlu0 %1473
          %1475 = vrot.lane.b32.xlu0 %v1470, 122
          %v1476 = vpop.permute.xlu0 %1475
          %v1479 = vadd.f32 %v1465, %v1474
          %v1480 = vadd.f32 %v1466, %v1476
          %v1481 = vld [vmem:[%s282 + $0x6] sm:$0xff]
          %v1482 = vld [vmem:[%s282 + $0xe] sm:$0xff]
          %s1483 = sld [smem:[#allocation5 + $0x5b]]
          %v1484 = vstv %s1483
          %v1485 = vmul.f32 %v1484, %v1481
          %v1486 = vmul.f32 %v1484, %v1482
          %v1487 = vadd.f32 %v1479, %v1485
          %v1488 = vadd.f32 %v1480, %v1486
          %s1489 = sld [smem:[#allocation5 + $0x5c]]
          %v1490 = vstv %s1489
          %v1491 = vmul.f32 %v1490, %v1481
          %v1492 = vmul.f32 %v1490, %v1482
          %1495 = vrot.lane.b32.xlu0 %v1491, 127
          %v1496 = vpop.permute.xlu0 %1495
          %1497 = vrot.lane.b32.xlu0 %v1492, 127
          %v1498 = vpop.permute.xlu0 %1497
          %v1501 = vadd.f32 %v1487, %v1496
          %v1502 = vadd.f32 %v1488, %v1498
          %s1503 = sld [smem:[#allocation5 + $0x5d]]
          %v1504 = vstv %s1503
          %v1505 = vmul.f32 %v1504, %v1481
          %v1506 = vmul.f32 %v1504, %v1482
          %1509 = vrot.lane.b32.xlu0 %v1505, 126
          %v1510 = vpop.permute.xlu0 %1509
          %1511 = vrot.lane.b32.xlu0 %v1506, 126
          %v1512 = vpop.permute.xlu0 %1511
          %v1515 = vadd.f32 %v1501, %v1510
          %v1516 = vadd.f32 %v1502, %v1512
          %s1517 = sld [smem:[#allocation5 + $0x5e]]
          %v1518 = vstv %s1517
          %v1519 = vmul.f32 %v1518, %v1481
          %v1520 = vmul.f32 %v1518, %v1482
          %1523 = vrot.lane.b32.xlu0 %v1519, 125
          %v1524 = vpop.permute.xlu0 %1523
          %1525 = vrot.lane.b32.xlu0 %v1520, 125
          %v1526 = vpop.permute.xlu0 %1525
          %v1529 = vadd.f32 %v1515, %v1524
          %v1530 = vadd.f32 %v1516, %v1526
          %s1531 = sld [smem:[#allocation5 + $0x5f]]
          %v1532 = vstv %s1531
          %v1533 = vmul.f32 %v1532, %v1481
          %v1534 = vmul.f32 %v1532, %v1482
          %1537 = vrot.lane.b32.xlu0 %v1533, 124
          %v1538 = vpop.permute.xlu0 %1537
          %1539 = vrot.lane.b32.xlu0 %v1534, 124
          %v1540 = vpop.permute.xlu0 %1539
          %v1543 = vadd.f32 %v1529, %v1538
          %v1544 = vadd.f32 %v1530, %v1540
          %s1545 = sld [smem:[#allocation5 + $0x60]]
          %v1546 = vstv %s1545
          %v1547 = vmul.f32 %v1546, %v1481
          %v1548 = vmul.f32 %v1546, %v1482
          %1551 = vrot.lane.b32.xlu0 %v1547, 123
          %v1552 = vpop.permute.xlu0 %1551
          %1553 = vrot.lane.b32.xlu0 %v1548, 123
          %v1554 = vpop.permute.xlu0 %1553
          %v1557 = vadd.f32 %v1543, %v1552
          %v1558 = vadd.f32 %v1544, %v1554
          %s1559 = sld [smem:[#allocation5 + $0x61]]
          %v1560 = vstv %s1559
          %v1561 = vmul.f32 %v1560, %v1481
          %v1562 = vmul.f32 %v1560, %v1482
          %1565 = vrot.lane.b32.xlu0 %v1561, 122
          %v1566 = vpop.permute.xlu0 %1565
          %1567 = vrot.lane.b32.xlu0 %v1562, 122
          %v1568 = vpop.permute.xlu0 %1567
          %v1571 = vadd.f32 %v1557, %v1566
          %v1572 = vadd.f32 %v1558, %v1568
          %v1573 = vsub.f32 0.0, %v1571
          %v1574 = vsub.f32 0.0, %v1572
          %v1575 = vmul.f32 %v1573, 1.442695
          %v1576 = vpow.pop %v1575
          %v1577 = vmul.f32 %v1574, 1.442695
          %v1578 = vpow.pop %v1577
          %v1579 = vadd.f32 %v1576, 1.0
          %v1580 = vadd.f32 %v1578, 1.0
          %v1581 = vrcp.pop %v1579
          %v1582 = vmul.f32 1.0, %v1581
          %v1583 = vrcp.pop %v1580
          %v1584 = vmul.f32 1.0, %v1583
          %1585 = vst.msk [vmem:[%s190] sm:$0xff] %vm213, %v1582
          %1586 = vst.msk [vmem:[%s190 + $0x8] sm:$0xff] %vm213, %v1584
        $region44: #{tpu_custom_call.1} parent=27 // pred_fallthru
          _
        %s1587 = sand.u32 %s89, 1
        %s1588 = scalar_lea.sflag [#allocation7], %s1587
        %s1589 = sand.u32 %s89, 1
        %s1590 = smul.addr %s1589, 16
        %s1591 = scalar_lea.vmem [#allocation10], %s1590
        // Predicated region
        $region45: #{tpu_custom_call.1} parent=27 // pred_check
          %p1592 = pneg %p99
        $region46: #{tpu_custom_call.1} parent=27 // pred_check_branch
          %1594 = sbr.rel (%p1592) target = $region48
        $region47: #{tpu_custom_call.1} parent=27 // pred_region
          %s1596 = ssub.s32 256, 256
          %1597 = vsyncadd %s1588, %s1596
          %s1598 = smul.addr %s24, 2
          %s1599 = smul.addr %s1598, 128
          %s1600 = scalar_lea.hbm %s2, %s1599
          %s1601 = sshll.u32 %s1591, 4
          %s1602 = int_to_ptr.vmem [resolvable:$true] %s1601
          %1607 = dma.vmem_to_hbm [thread:$0]  %s1602, 256, %s1600, %s1588, 128, 128, 8
        $region48: #{tpu_custom_call.1} parent=27 // pred_fallthru
          _
      $region28: #{tpu_custom_call.1} parent=5 // pred_fallthru
        _
      %p1608 = scmp.le.s32.totalorder 2, %s15
      // Predicated region
      $region49: #{tpu_custom_call.1} parent=5 // pred_check
        %p1609 = pneg %p1608
      $region50: #{tpu_custom_call.1} parent=5 // pred_check_branch
        %1611 = sbr.rel (%p1609) target = $region52
      $region51: #{tpu_custom_call.1} parent=5 // pred_region
        %s1612 = ssub.s32 %s15, 2
        // Predicated region
        $region53: #{tpu_custom_call.1} parent=51 // pred_check
          %p1613 = pneg %p105
        $region54: #{tpu_custom_call.1} parent=51 // pred_check_branch
          %1615 = sbr.rel (%p1613) target = $region56
        $region55: #{tpu_custom_call.1} parent=51 // pred_region
          %s1616 = sand.u32 %s90, 1
          %s1617 = scalar_lea.sflag [#allocation7], %s1616
          %s1618 = sand.u32 %s90, 1
          %s1619 = smul.addr %s1618, 16
          %s1620 = scalar_lea.vmem [#allocation10], %s1619
          %1621 = dma.done %s1617, 256
        $region56: #{tpu_custom_call.1} parent=51 // pred_fallthru
          _
      $region52: #{tpu_custom_call.1} parent=5 // pred_fallthru
        _
    $region6: #{tpu_custom_call.1} parent=1 // loop_footer
      %s19 = sadd.s32 1, %s15
    $region7: #{tpu_custom_call.1} parent=1 // loop_footer_branch
      %14 = sbr.rel target = $region3
    $region8: #{tpu_custom_call.1} parent=1 // loop_exit
      _
    %1622 = vsyncpa [#allocation6], 1
    %s1623 = scalar_lea.sflag [#allocation6], 1
    %1624 = vsyncpa %s1623, 1
    %1625 = vsyncpa [#allocation7], 1
    %s1626 = scalar_lea.sflag [#allocation7], 1
    %1627 = vsyncpa %s1626, 1
    %1628 = vsyncpa [#allocation8], 1
    %s1629 = scalar_lea.sflag [#allocation8], 1
    %1630 = vsyncpa %s1629, 1

</llo_original>
